<compile_context>
chip_gen: v6e
topology: v6e:2x2x1
jax: 0.10.0
libtpu: 0.0.40
codegen_flags: <defaults>
</compile_context>

<pallas_src>
import math
import jax
import jax.numpy as jnp
from jax.experimental import pallas as pl
from jax.experimental.pallas import tpu as pltpu

# ---- small hyper-parameters consistent with BertConfig semantics ----
B, S = 2, 8                  # batch, sequence length
BS = B * S
H = 128                      # hidden_size
NUM_HEADS = 4                # num_attention_heads
HEAD = H // NUM_HEADS        # attention_head_size
INTER = 4 * H                # intermediate_size
EPS = 1e-12                  # BertLayerNorm eps

# bf16 operands / f32 accumulation is MXU-native on v5e/v6e/v7x.
MXU_DTYPE = jnp.bfloat16


# ------------------------- in-kernel helpers -------------------------

def _mm(a, b):
    """2-D matmul on the MXU, bf16 operands / f32 accumulation."""
    return jnp.dot(a.astype(MXU_DTYPE), b.astype(MXU_DTYPE),
                   preferred_element_type=jnp.float32)


def _bmm(spec, a, b):
    """Head-batched matmul on the MXU, bf16 operands / f32 accumulation."""
    return jnp.einsum(spec, a.astype(MXU_DTYPE), b.astype(MXU_DTYPE),
                      preferred_element_type=jnp.float32)


def _erf(x):
    # float32-accurate rational erf (Cephes-style), built only from mul/add/div/clip.
    alpha = (0.00022905065861350646, 0.0034082910107109506, 0.050955695062380861,
             0.18520832239976145, 1.128379143519084)
    beta = (-1.1791602954361697e-7, 0.000023547966471313185, 0.0010179625278914885,
            0.014070470171167667, 0.11098505178285362, 0.49746925110067538, 1.0)
    x = jnp.clip(x, -3.832506856900711, 3.832506856900711)
    x2 = x * x
    p = jnp.float32(alpha[0])
    for c in alpha[1:]:
        p = p * x2 + jnp.float32(c)
    q = jnp.float32(beta[0])
    for c in beta[1:]:
        q = q * x2 + jnp.float32(c)
    return (x * p) / q


def _gelu(x):
    # matches the reference erf-based gelu: x * 0.5 * (1 + erf(x / sqrt(2)))
    return x * 0.5 * (1.0 + _erf(x * (1.0 / math.sqrt(2.0))))


def _layernorm(x, gamma, beta):
    # reference formulation: u = E[x]; s = E[(x-u)^2]
    u = jnp.mean(x, axis=-1, keepdims=True)
    d = x - u
    s = jnp.mean(d * d, axis=-1, keepdims=True)
    return gamma * (d * jax.lax.rsqrt(s + EPS)) + beta


# ------------------------- fused BertLayer kernel -------------------------

def bert_layer_kernel(x_ref, mask_ref,
                      wq_ref, bq_ref, wo_ref, bo_ref, g1_ref, b1_ref,
                      wi_ref, bi_ref, wf_ref, bf_ref, g2_ref, b2_ref,
                      out_ref):
    x = x_ref[...]                                                   # (BS, H) f32

    # ---- BertSelfAttention (Q = K = V = query projection, as in the reference) ----
    q = _mm(x, wq_ref[...]) + bq_ref[...]                            # (BS, H), one full-K matmul
    # head split via static lane slices, heads batched (no per-batch loop)
    qh = jnp.stack([q[:, h * HEAD:(h + 1) * HEAD] for h in range(NUM_HEADS)],
                   axis=0)                                           # (NH, BS, HEAD)
    scale = 1.0 / math.sqrt(HEAD)
    scores = _bmm('hqd,hkd->hqk', qh * scale, qh)                    # (NH, BS, BS)
    scores = scores + mask_ref[...][None, :, :]                      # block-diagonal + padding mask
    scores = scores - jnp.max(scores, axis=-1, keepdims=True)
    p = jnp.exp(scores)
    # approx reciprocal runs on the EUP slot; swap for exact 1/x if f32 bit-parity is required
    p = p * pl.reciprocal(jnp.sum(p, axis=-1, keepdims=True), approx=True)
    ctx = _bmm('hqk,hkd->hqd', p, qh)                                # (NH, BS, HEAD)
    ctx2 = jnp.concatenate([ctx[h] for h in range(NUM_HEADS)], axis=-1)  # (BS, H)

    # ---- BertSelfOutput: dense + residual + LayerNorm ----
    att = _mm(ctx2, wo_ref[...]) + bo_ref[...]                       # (BS, H), one full-K matmul
    h1 = _layernorm(att + x, g1_ref[...], b1_ref[...])

    # ---- BertIntermediate (gelu) + BertOutput: dense + residual + LayerNorm ----
    inter = _gelu(_mm(h1, wi_ref[...]) + bi_ref[...])                # (BS, INTER)
    ff = _mm(inter, wf_ref[...]) + bf_ref[...]                       # (BS, H)
    out_ref[...] = _layernorm(ff + h1, g2_ref[...], b2_ref[...])


# ------------------------- pallas_call wrapper -------------------------

def _fs(shape):
    n = len(shape)
    return pl.BlockSpec(shape, lambda i, n=n: (0,) * n)


def run_bert_layer(x2d, mask2d, p):
    args = (x2d, mask2d,
            p["wq"], p["bq"], p["wo"], p["bo"], p["g1"], p["b1"],
            p["wi"], p["bi"], p["wf"], p["bf"], p["g2"], p["b2"])
    return pl.pallas_call(
        bert_layer_kernel,
        out_shape=jax.ShapeDtypeStruct((BS, H), jnp.float32),
        grid=(1,),
        in_specs=[_fs(a.shape) for a in args],
        out_specs=_fs((BS, H)),
        compiler_params=pltpu.CompilerParams(dimension_semantics=("arbitrary",)),
    )(*args)


# ------------------------- parameter init & forward glue -------------------------

def init_params(key):
    """Weights are created in f32 and matmul weights are pre-cast to bf16 ONCE here."""
    std = 0.02
    ks = jax.random.split(key, 8)

    def w(k, din, dout):   # pre-transposed to [in, out]
        return (std * jax.random.normal(k, (din, dout), jnp.float32)).astype(MXU_DTYPE)

    def b(k, dout):
        return std * jax.random.normal(k, (1, dout), jnp.float32)

    return {
        "wq": w(ks[0], H, H), "bq": b(ks[1], H),
        "wo": w(ks[2], H, H), "bo": b(ks[3], H),
        "g1": jnp.ones((1, H), jnp.float32), "b1": jnp.zeros((1, H), jnp.float32),
        "wi": w(ks[4], H, INTER), "bi": b(ks[5], INTER),
        "wf": w(ks[6], INTER, H), "bf": b(ks[7], H),
        "g2": jnp.ones((1, H), jnp.float32), "b2": jnp.zeros((1, H), jnp.float32),
    }


def bert_layer_forward(hidden_states, attention_mask, params):
    """hidden_states: (B, S, H) f32.  attention_mask: (B, S), 1 = keep, 0 = pad.

    Builds the reference's additive mask (1 - m) * -10000 and extends it to a
    (BS, BS) block-diagonal mask so the whole batch is attended in one shot.
    Returns (layer_output, attention_matrices=None) like BertLayer.forward.
    """
    ext = (1.0 - attention_mask.astype(jnp.float32)) * -10000.0      # (B, S)
    batch_idx = jnp.arange(BS, dtype=jnp.int32) // S
    same = batch_idx[:, None] == batch_idx[None, :]
    full_mask = jnp.where(same, ext.reshape(BS)[None, :], jnp.float32(-10000.0))  # (BS, BS)

    out2d = run_bert_layer(hidden_states.reshape(BS, H), full_mask, params)
    return out2d.reshape(B, S, H), None


if __name__ == "__main__":
    key = jax.random.PRNGKey(0)
    kp, kx = jax.random.split(key)
    params = init_params(kp)
    hidden_states = 0.02 * jax.random.normal(kx, (B, S, H), jnp.float32)
    # pad the last two tokens of the second sequence
    attention_mask = jnp.ones((B, S), jnp.float32).at[1, S - 2:].set(0.0)

    layer_output, attn_mats = bert_layer_forward(hidden_states, attention_mask, params)
    jax.block_until_ready(layer_output)
    assert layer_output.shape == (B, S, H)
    print("KERNEL_OK")
</pallas_src>

<mosaic_0001>
module attributes {stable_mosaic.version = 11 : i64} {
  func.func @bert_layer_kernel(%arg0: i32, %arg1: memref<16x128xf32, #tpu.memory_space<vmem>>, %arg2: memref<16x16xf32, #tpu.memory_space<vmem>>, %arg3: memref<128x128xbf16, #tpu.memory_space<vmem>>, %arg4: memref<1x128xf32, #tpu.memory_space<vmem>>, %arg5: memref<128x128xbf16, #tpu.memory_space<vmem>>, %arg6: memref<1x128xf32, #tpu.memory_space<vmem>>, %arg7: memref<1x128xf32, #tpu.memory_space<vmem>>, %arg8: memref<1x128xf32, #tpu.memory_space<vmem>>, %arg9: memref<128x512xbf16, #tpu.memory_space<vmem>>, %arg10: memref<1x512xf32, #tpu.memory_space<vmem>>, %arg11: memref<512x128xbf16, #tpu.memory_space<vmem>>, %arg12: memref<1x128xf32, #tpu.memory_space<vmem>>, %arg13: memref<1x128xf32, #tpu.memory_space<vmem>>, %arg14: memref<1x128xf32, #tpu.memory_space<vmem>>, %arg15: memref<16x128xf32, #tpu.memory_space<vmem>>) attributes {dimension_semantics = [#tpu.dimension_semantics<arbitrary>], iteration_bounds = array<i64: 1>, scalar_prefetch = 0 : i64, scratch_operands = 0 : i64, tpu.core_type = #tpu.core_type<tc>, window_params = [{pipeline_mode = #tpu.pipeline_mode<synchronous>, transform_indices = @transform_0, window_bounds = array<i64: 16, 128>}, {pipeline_mode = #tpu.pipeline_mode<synchronous>, transform_indices = @transform_1, window_bounds = array<i64: 16, 16>}, {pipeline_mode = #tpu.pipeline_mode<synchronous>, transform_indices = @transform_2, window_bounds = array<i64: 128, 128>}, {pipeline_mode = #tpu.pipeline_mode<synchronous>, transform_indices = @transform_3, window_bounds = array<i64: 1, 128>}, {pipeline_mode = #tpu.pipeline_mode<synchronous>, transform_indices = @transform_4, window_bounds = array<i64: 128, 128>}, {pipeline_mode = #tpu.pipeline_mode<synchronous>, transform_indices = @transform_5, window_bounds = array<i64: 1, 128>}, {pipeline_mode = #tpu.pipeline_mode<synchronous>, transform_indices = @transform_6, window_bounds = array<i64: 1, 128>}, {pipeline_mode = #tpu.pipeline_mode<synchronous>, transform_indices = @transform_7, window_bounds = array<i64: 1, 128>}, {pipeline_mode = #tpu.pipeline_mode<synchronous>, transform_indices = @transform_8, window_bounds = array<i64: 128, 512>}, {pipeline_mode = #tpu.pipeline_mode<synchronous>, transform_indices = @transform_9, window_bounds = array<i64: 1, 512>}, {pipeline_mode = #tpu.pipeline_mode<synchronous>, transform_indices = @transform_10, window_bounds = array<i64: 512, 128>}, {pipeline_mode = #tpu.pipeline_mode<synchronous>, transform_indices = @transform_11, window_bounds = array<i64: 1, 128>}, {pipeline_mode = #tpu.pipeline_mode<synchronous>, transform_indices = @transform_12, window_bounds = array<i64: 1, 128>}, {pipeline_mode = #tpu.pipeline_mode<synchronous>, transform_indices = @transform_13, window_bounds = array<i64: 1, 128>}, {pipeline_mode = #tpu.pipeline_mode<synchronous>, transform_indices = @transform_14, window_bounds = array<i64: 16, 128>}]} {
    %c0 = arith.constant 0 : index
    %c0_0 = arith.constant 0 : index
    %0 = vector.load %arg1[%c0, %c0_0] : memref<16x128xf32, #tpu.memory_space<vmem>>, vector<16x128xf32>
    %c0_1 = arith.constant 0 : index
    %c0_2 = arith.constant 0 : index
    %1 = vector.load %arg3[%c0_1, %c0_2] : memref<128x128xbf16, #tpu.memory_space<vmem>>, vector<128x128xbf16>
    %2 = arith.truncf %0 : vector<16x128xf32> to vector<16x128xbf16>
    %cst = arith.constant dense<0.000000e+00> : vector<16x128xf32>
    %3 = tpu.matmul %2, %1, %cst {dimension_numbers = #tpu.dot_dimension_numbers<[1], [0], [0], [1], [0, 0, 1, 1], [], []>} : vector<16x128xbf16>, vector<128x128xbf16>, vector<16x128xf32> -> vector<16x128xf32>
    %c0_3 = arith.constant 0 : index
    %c0_4 = arith.constant 0 : index
    %4 = vector.load %arg4[%c0_3, %c0_4] : memref<1x128xf32, #tpu.memory_space<vmem>>, vector<1x128xf32>
    %5 = vector.broadcast %4 : vector<1x128xf32> to vector<16x128xf32>
    %6 = arith.addf %3, %5 : vector<16x128xf32>
    %7 = vector.extract_strided_slice %6 {offsets = [0, 0], sizes = [16, 32], strides = [1, 1]} : vector<16x128xf32> to vector<16x32xf32>
    %8 = vector.extract_strided_slice %6 {offsets = [0, 32], sizes = [16, 32], strides = [1, 1]} : vector<16x128xf32> to vector<16x32xf32>
    %9 = vector.extract_strided_slice %6 {offsets = [0, 64], sizes = [16, 32], strides = [1, 1]} : vector<16x128xf32> to vector<16x32xf32>
    %10 = vector.extract_strided_slice %6 {offsets = [0, 96], sizes = [16, 32], strides = [1, 1]} : vector<16x128xf32> to vector<16x32xf32>
    %11 = vector.shape_cast %7 : vector<16x32xf32> to vector<1x16x32xf32>
    %12 = vector.shape_cast %8 : vector<16x32xf32> to vector<1x16x32xf32>
    %13 = vector.shape_cast %9 : vector<16x32xf32> to vector<1x16x32xf32>
    %14 = vector.shape_cast %10 : vector<16x32xf32> to vector<1x16x32xf32>
    %15 = tpu.concatenate %11, %12, %13, %14 in 0 : vector<1x16x32xf32>, vector<1x16x32xf32>, vector<1x16x32xf32>, vector<1x16x32xf32> -> vector<4x16x32xf32>
    %cst_5 = arith.constant 0.176776692 : f32
    %16 = vector.broadcast %cst_5 : f32 to vector<4x16x32xf32>
    %17 = arith.mulf %15, %16 : vector<4x16x32xf32>
    %18 = arith.truncf %17 : vector<4x16x32xf32> to vector<4x16x32xbf16>
    %19 = arith.truncf %15 : vector<4x16x32xf32> to vector<4x16x32xbf16>
    "tpu.trace_start"() <{level = 10 : i32, message = "hqd,hkd->hqk"}> : () -> ()
    %cst_6 = arith.constant dense<0.000000e+00> : vector<4x16x16xf32>
    %20 = tpu.matmul %18, %19, %cst_6 {dimension_numbers = #tpu.dot_dimension_numbers<[2], [2], [1], [1], [0, 0, 0, 1, 1, 1], [0], [0]>} : vector<4x16x32xbf16>, vector<4x16x32xbf16>, vector<4x16x16xf32> -> vector<4x16x16xf32>
    "tpu.trace_stop"() : () -> ()
    %c0_7 = arith.constant 0 : index
    %c0_8 = arith.constant 0 : index
    %21 = vector.load %arg2[%c0_7, %c0_8] : memref<16x16xf32, #tpu.memory_space<vmem>>, vector<16x16xf32>
    %22 = vector.shape_cast %21 : vector<16x16xf32> to vector<1x16x16xf32>
    %23 = vector.broadcast %22 : vector<1x16x16xf32> to vector<4x16x16xf32>
    %24 = arith.addf %20, %23 : vector<4x16x16xf32>
    %cst_9 = arith.constant dense<0xFF800000> : vector<4x16xf32>
    %25 = vector.multi_reduction <maximumf>, %24, %cst_9 [2] : vector<4x16x16xf32> to vector<4x16xf32>
    %26 = vector.shape_cast %25 : vector<4x16xf32> to vector<4x16x1xf32>
    %27 = vector.broadcast %26 : vector<4x16x1xf32> to vector<4x16x16xf32>
    %28 = arith.subf %24, %27 : vector<4x16x16xf32>
    %29 = math.exp %28 : vector<4x16x16xf32>
    %cst_10 = arith.constant dense<0.000000e+00> : vector<4x16xf32>
    %30 = vector.multi_reduction <add>, %29, %cst_10 [2] : vector<4x16x16xf32> to vector<4x16xf32>
    %31 = vector.shape_cast %30 : vector<4x16xf32> to vector<4x16x1xf32>
    %32 = tpu.reciprocal %31 {approx = true} : vector<4x16x1xf32> -> vector<4x16x1xf32>
    %33 = vector.broadcast %32 : vector<4x16x1xf32> to vector<4x16x16xf32>
    %34 = arith.mulf %29, %33 : vector<4x16x16xf32>
    %35 = arith.truncf %34 : vector<4x16x16xf32> to vector<4x16x16xbf16>
    %36 = arith.truncf %15 : vector<4x16x32xf32> to vector<4x16x32xbf16>
    "tpu.trace_start"() <{level = 10 : i32, message = "hqk,hkd->hqd"}> : () -> ()
    %cst_11 = arith.constant dense<0.000000e+00> : vector<4x16x32xf32>
    %37 = tpu.matmul %35, %36, %cst_11 {dimension_numbers = #tpu.dot_dimension_numbers<[2], [1], [1], [2], [0, 0, 0, 1, 1, 2], [0], [0]>} : vector<4x16x16xbf16>, vector<4x16x32xbf16>, vector<4x16x32xf32> -> vector<4x16x32xf32>
    "tpu.trace_stop"() : () -> ()
    %38 = vector.extract_strided_slice %37 {offsets = [0, 0, 0], sizes = [1, 16, 32], strides = [1, 1, 1]} : vector<4x16x32xf32> to vector<1x16x32xf32>
    %39 = vector.shape_cast %38 : vector<1x16x32xf32> to vector<16x32xf32>
    %40 = vector.extract_strided_slice %37 {offsets = [1, 0, 0], sizes = [1, 16, 32], strides = [1, 1, 1]} : vector<4x16x32xf32> to vector<1x16x32xf32>
    %41 = vector.shape_cast %40 : vector<1x16x32xf32> to vector<16x32xf32>
    %42 = vector.extract_strided_slice %37 {offsets = [2, 0, 0], sizes = [1, 16, 32], strides = [1, 1, 1]} : vector<4x16x32xf32> to vector<1x16x32xf32>
    %43 = vector.shape_cast %42 : vector<1x16x32xf32> to vector<16x32xf32>
    %44 = vector.extract_strided_slice %37 {offsets = [3, 0, 0], sizes = [1, 16, 32], strides = [1, 1, 1]} : vector<4x16x32xf32> to vector<1x16x32xf32>
    %45 = vector.shape_cast %44 : vector<1x16x32xf32> to vector<16x32xf32>
    %46 = tpu.concatenate %39, %41, %43, %45 in 1 : vector<16x32xf32>, vector<16x32xf32>, vector<16x32xf32>, vector<16x32xf32> -> vector<16x128xf32>
    %c0_12 = arith.constant 0 : index
    %c0_13 = arith.constant 0 : index
    %47 = vector.load %arg5[%c0_12, %c0_13] : memref<128x128xbf16, #tpu.memory_space<vmem>>, vector<128x128xbf16>
    %48 = arith.truncf %46 : vector<16x128xf32> to vector<16x128xbf16>
    %cst_14 = arith.constant dense<0.000000e+00> : vector<16x128xf32>
    %49 = tpu.matmul %48, %47, %cst_14 {dimension_numbers = #tpu.dot_dimension_numbers<[1], [0], [0], [1], [0, 0, 1, 1], [], []>} : vector<16x128xbf16>, vector<128x128xbf16>, vector<16x128xf32> -> vector<16x128xf32>
    %c0_15 = arith.constant 0 : index
    %c0_16 = arith.constant 0 : index
    %50 = vector.load %arg6[%c0_15, %c0_16] : memref<1x128xf32, #tpu.memory_space<vmem>>, vector<1x128xf32>
    %51 = vector.broadcast %50 : vector<1x128xf32> to vector<16x128xf32>
    %52 = arith.addf %49, %51 : vector<16x128xf32>
    %53 = arith.addf %52, %0 : vector<16x128xf32>
    %c0_17 = arith.constant 0 : index
    %c0_18 = arith.constant 0 : index
    %54 = vector.load %arg7[%c0_17, %c0_18] : memref<1x128xf32, #tpu.memory_space<vmem>>, vector<1x128xf32>
    %c0_19 = arith.constant 0 : index
    %c0_20 = arith.constant 0 : index
    %55 = vector.load %arg8[%c0_19, %c0_20] : memref<1x128xf32, #tpu.memory_space<vmem>>, vector<1x128xf32>
    %cst_21 = arith.constant dense<0.000000e+00> : vector<16xf32>
    %56 = vector.multi_reduction <add>, %53, %cst_21 [1] : vector<16x128xf32> to vector<16xf32>
    %57 = vector.shape_cast %56 : vector<16xf32> to vector<16x1xf32>
    %cst_22 = arith.constant 1.280000e+02 : f32
    %58 = vector.broadcast %cst_22 : f32 to vector<16x1xf32>
    %59 = arith.divf %57, %58 : vector<16x1xf32>
    %60 = vector.broadcast %59 : vector<16x1xf32> to vector<16x128xf32>
    %61 = arith.subf %53, %60 : vector<16x128xf32>
    %62 = arith.mulf %61, %61 : vector<16x128xf32>
    %cst_23 = arith.constant dense<0.000000e+00> : vector<16xf32>
    %63 = vector.multi_reduction <add>, %62, %cst_23 [1] : vector<16x128xf32> to vector<16xf32>
    %64 = vector.shape_cast %63 : vector<16xf32> to vector<16x1xf32>
    %cst_24 = arith.constant 1.280000e+02 : f32
    %65 = vector.broadcast %cst_24 : f32 to vector<16x1xf32>
    %66 = arith.divf %64, %65 : vector<16x1xf32>
    %cst_25 = arith.constant 9.99999996E-13 : f32
    %67 = vector.broadcast %cst_25 : f32 to vector<16x1xf32>
    %68 = arith.addf %66, %67 : vector<16x1xf32>
    %69 = math.rsqrt %68 : vector<16x1xf32>
    %70 = vector.broadcast %69 : vector<16x1xf32> to vector<16x128xf32>
    %71 = arith.mulf %61, %70 : vector<16x128xf32>
    %72 = vector.broadcast %54 : vector<1x128xf32> to vector<16x128xf32>
    %73 = arith.mulf %72, %71 : vector<16x128xf32>
    %74 = vector.broadcast %55 : vector<1x128xf32> to vector<16x128xf32>
    %75 = arith.addf %73, %74 : vector<16x128xf32>
    %c0_26 = arith.constant 0 : index
    %c0_27 = arith.constant 0 : index
    %76 = vector.load %arg9[%c0_26, %c0_27] : memref<128x512xbf16, #tpu.memory_space<vmem>>, vector<128x512xbf16>
    %77 = arith.truncf %75 : vector<16x128xf32> to vector<16x128xbf16>
    %cst_28 = arith.constant dense<0.000000e+00> : vector<16x512xf32>
    %78 = tpu.matmul %77, %76, %cst_28 {dimension_numbers = #tpu.dot_dimension_numbers<[1], [0], [0], [1], [0, 0, 1, 1], [], []>} : vector<16x128xbf16>, vector<128x512xbf16>, vector<16x512xf32> -> vector<16x512xf32>
    %c0_29 = arith.constant 0 : index
    %c0_30 = arith.constant 0 : index
    %79 = vector.load %arg10[%c0_29, %c0_30] : memref<1x512xf32, #tpu.memory_space<vmem>>, vector<1x512xf32>
    %80 = vector.broadcast %79 : vector<1x512xf32> to vector<16x512xf32>
    %81 = arith.addf %78, %80 : vector<16x512xf32>
    %cst_31 = arith.constant 5.000000e-01 : f32
    %82 = vector.broadcast %cst_31 : f32 to vector<16x512xf32>
    %83 = arith.mulf %81, %82 : vector<16x512xf32>
    %cst_32 = arith.constant 0.707106769 : f32
    %84 = vector.broadcast %cst_32 : f32 to vector<16x512xf32>
    %85 = arith.mulf %81, %84 : vector<16x512xf32>
    %cst_33 = arith.constant -3.8325069 : f32
    %cst_34 = arith.constant 3.8325069 : f32
    %86 = vector.broadcast %cst_33 : f32 to vector<16x512xf32>
    %87 = arith.maximumf %86, %85 : vector<16x512xf32>
    %88 = vector.broadcast %cst_34 : f32 to vector<16x512xf32>
    %89 = arith.minimumf %88, %87 : vector<16x512xf32>
    %90 = arith.mulf %89, %89 : vector<16x512xf32>
    %cst_35 = arith.constant 2.29050653E-4 : f32
    %91 = vector.broadcast %cst_35 : f32 to vector<16x512xf32>
    %92 = arith.mulf %91, %90 : vector<16x512xf32>
    %cst_36 = arith.constant 0.00340829091 : f32
    %93 = vector.broadcast %cst_36 : f32 to vector<16x512xf32>
    %94 = arith.addf %92, %93 : vector<16x512xf32>
    %95 = arith.mulf %94, %90 : vector<16x512xf32>
    %cst_37 = arith.constant 0.0509556942 : f32
    %96 = vector.broadcast %cst_37 : f32 to vector<16x512xf32>
    %97 = arith.addf %95, %96 : vector<16x512xf32>
    %98 = arith.mulf %97, %90 : vector<16x512xf32>
    %cst_38 = arith.constant 0.185208321 : f32
    %99 = vector.broadcast %cst_38 : f32 to vector<16x512xf32>
    %100 = arith.addf %98, %99 : vector<16x512xf32>
    %101 = arith.mulf %100, %90 : vector<16x512xf32>
    %cst_39 = arith.constant 1.12837911 : f32
    %102 = vector.broadcast %cst_39 : f32 to vector<16x512xf32>
    %103 = arith.addf %101, %102 : vector<16x512xf32>
    %cst_40 = arith.constant -1.17916031E-7 : f32
    %104 = vector.broadcast %cst_40 : f32 to vector<16x512xf32>
    %105 = arith.mulf %104, %90 : vector<16x512xf32>
    %cst_41 = arith.constant 2.35479656E-5 : f32
    %106 = vector.broadcast %cst_41 : f32 to vector<16x512xf32>
    %107 = arith.addf %105, %106 : vector<16x512xf32>
    %108 = arith.mulf %107, %90 : vector<16x512xf32>
    %cst_42 = arith.constant 0.00101796258 : f32
    %109 = vector.broadcast %cst_42 : f32 to vector<16x512xf32>
    %110 = arith.addf %108, %109 : vector<16x512xf32>
    %111 = arith.mulf %110, %90 : vector<16x512xf32>
    %cst_43 = arith.constant 0.0140704699 : f32
    %112 = vector.broadcast %cst_43 : f32 to vector<16x512xf32>
    %113 = arith.addf %111, %112 : vector<16x512xf32>
    %114 = arith.mulf %113, %90 : vector<16x512xf32>
    %cst_44 = arith.constant 0.110985048 : f32
    %115 = vector.broadcast %cst_44 : f32 to vector<16x512xf32>
    %116 = arith.addf %114, %115 : vector<16x512xf32>
    %117 = arith.mulf %116, %90 : vector<16x512xf32>
    %cst_45 = arith.constant 0.497469246 : f32
    %118 = vector.broadcast %cst_45 : f32 to vector<16x512xf32>
    %119 = arith.addf %117, %118 : vector<16x512xf32>
    %120 = arith.mulf %119, %90 : vector<16x512xf32>
    %cst_46 = arith.constant 1.000000e+00 : f32
    %121 = vector.broadcast %cst_46 : f32 to vector<16x512xf32>
    %122 = arith.addf %120, %121 : vector<16x512xf32>
    %123 = arith.mulf %89, %103 : vector<16x512xf32>
    %124 = arith.divf %123, %122 : vector<16x512xf32>
    %cst_47 = arith.constant 1.000000e+00 : f32
    %125 = vector.broadcast %cst_47 : f32 to vector<16x512xf32>
    %126 = arith.addf %125, %124 : vector<16x512xf32>
    %127 = arith.mulf %83, %126 : vector<16x512xf32>
    %c0_48 = arith.constant 0 : index
    %c0_49 = arith.constant 0 : index
    %128 = vector.load %arg11[%c0_48, %c0_49] : memref<512x128xbf16, #tpu.memory_space<vmem>>, vector<512x128xbf16>
    %129 = arith.truncf %127 : vector<16x512xf32> to vector<16x512xbf16>
    %cst_50 = arith.constant dense<0.000000e+00> : vector<16x128xf32>
    %130 = tpu.matmul %129, %128, %cst_50 {dimension_numbers = #tpu.dot_dimension_numbers<[1], [0], [0], [1], [0, 0, 1, 1], [], []>} : vector<16x512xbf16>, vector<512x128xbf16>, vector<16x128xf32> -> vector<16x128xf32>
    %c0_51 = arith.constant 0 : index
    %c0_52 = arith.constant 0 : index
    %131 = vector.load %arg12[%c0_51, %c0_52] : memref<1x128xf32, #tpu.memory_space<vmem>>, vector<1x128xf32>
    %132 = vector.broadcast %131 : vector<1x128xf32> to vector<16x128xf32>
    %133 = arith.addf %130, %132 : vector<16x128xf32>
    %134 = arith.addf %133, %75 : vector<16x128xf32>
    %c0_53 = arith.constant 0 : index
    %c0_54 = arith.constant 0 : index
    %135 = vector.load %arg13[%c0_53, %c0_54] : memref<1x128xf32, #tpu.memory_space<vmem>>, vector<1x128xf32>
    %c0_55 = arith.constant 0 : index
    %c0_56 = arith.constant 0 : index
    %136 = vector.load %arg14[%c0_55, %c0_56] : memref<1x128xf32, #tpu.memory_space<vmem>>, vector<1x128xf32>
    %cst_57 = arith.constant dense<0.000000e+00> : vector<16xf32>
    %137 = vector.multi_reduction <add>, %134, %cst_57 [1] : vector<16x128xf32> to vector<16xf32>
    %138 = vector.shape_cast %137 : vector<16xf32> to vector<16x1xf32>
    %cst_58 = arith.constant 1.280000e+02 : f32
    %139 = vector.broadcast %cst_58 : f32 to vector<16x1xf32>
    %140 = arith.divf %138, %139 : vector<16x1xf32>
    %141 = vector.broadcast %140 : vector<16x1xf32> to vector<16x128xf32>
    %142 = arith.subf %134, %141 : vector<16x128xf32>
    %143 = arith.mulf %142, %142 : vector<16x128xf32>
    %cst_59 = arith.constant dense<0.000000e+00> : vector<16xf32>
    %144 = vector.multi_reduction <add>, %143, %cst_59 [1] : vector<16x128xf32> to vector<16xf32>
    %145 = vector.shape_cast %144 : vector<16xf32> to vector<16x1xf32>
    %cst_60 = arith.constant 1.280000e+02 : f32
    %146 = vector.broadcast %cst_60 : f32 to vector<16x1xf32>
    %147 = arith.divf %145, %146 : vector<16x1xf32>
    %cst_61 = arith.constant 9.99999996E-13 : f32
    %148 = vector.broadcast %cst_61 : f32 to vector<16x1xf32>
    %149 = arith.addf %147, %148 : vector<16x1xf32>
    %150 = math.rsqrt %149 : vector<16x1xf32>
    %151 = vector.broadcast %150 : vector<16x1xf32> to vector<16x128xf32>
    %152 = arith.mulf %142, %151 : vector<16x128xf32>
    %153 = vector.broadcast %135 : vector<1x128xf32> to vector<16x128xf32>
    %154 = arith.mulf %153, %152 : vector<16x128xf32>
    %155 = vector.broadcast %136 : vector<1x128xf32> to vector<16x128xf32>
    %156 = arith.addf %154, %155 : vector<16x128xf32>
    %c0_62 = arith.constant 0 : index
    %c0_63 = arith.constant 0 : index
    %157 = vector.load %arg15[%c0_62, %c0_63] : memref<16x128xf32, #tpu.memory_space<vmem>>, vector<16x128xf32>
    tpu.vector_store %arg15[%c0_62, %c0_63], %156 {strides = array<i32>} : memref<16x128xf32, #tpu.memory_space<vmem>>, vector<16x128xf32>,
    return
  }
  func.func @transform_0(%arg0: i32) -> (i32, i32) {
    %c0_i32 = arith.constant 0 : i32
    %c0_i32_0 = arith.constant 0 : i32
    %c0_i32_1 = arith.constant 0 : i32
    return %c0_i32, %c0_i32_0 : i32, i32
  }
  func.func @transform_1(%arg0: i32) -> (i32, i32) {
    %c0_i32 = arith.constant 0 : i32
    %c0_i32_0 = arith.constant 0 : i32
    %c0_i32_1 = arith.constant 0 : i32
    return %c0_i32, %c0_i32_0 : i32, i32
  }
  func.func @transform_2(%arg0: i32) -> (i32, i32) {
    %c0_i32 = arith.constant 0 : i32
    %c0_i32_0 = arith.constant 0 : i32
    %c0_i32_1 = arith.constant 0 : i32
    return %c0_i32, %c0_i32_0 : i32, i32
  }
  func.func @transform_3(%arg0: i32) -> (i32, i32) {
    %c0_i32 = arith.constant 0 : i32
    %c0_i32_0 = arith.constant 0 : i32
    %c0_i32_1 = arith.constant 0 : i32
    return %c0_i32, %c0_i32_0 : i32, i32
  }
  func.func @transform_4(%arg0: i32) -> (i32, i32) {
    %c0_i32 = arith.constant 0 : i32
    %c0_i32_0 = arith.constant 0 : i32
    %c0_i32_1 = arith.constant 0 : i32
    return %c0_i32, %c0_i32_0 : i32, i32
  }
  func.func @transform_5(%arg0: i32) -> (i32, i32) {
    %c0_i32 = arith.constant 0 : i32
    %c0_i32_0 = arith.constant 0 : i32
    %c0_i32_1 = arith.constant 0 : i32
    return %c0_i32, %c0_i32_0 : i32, i32
  }
  func.func @transform_6(%arg0: i32) -> (i32, i32) {
    %c0_i32 = arith.constant 0 : i32
    %c0_i32_0 = arith.constant 0 : i32
    %c0_i32_1 = arith.constant 0 : i32
    return %c0_i32, %c0_i32_0 : i32, i32
  }
  func.func @transform_7(%arg0: i32) -> (i32, i32) {
    %c0_i32 = arith.constant 0 : i32
    %c0_i32_0 = arith.constant 0 : i32
    %c0_i32_1 = arith.constant 0 : i32
    return %c0_i32, %c0_i32_0 : i32, i32
  }
  func.func @transform_8(%arg0: i32) -> (i32, i32) {
    %c0_i32 = arith.constant 0 : i32
    %c0_i32_0 = arith.constant 0 : i32
    %c0_i32_1 = arith.constant 0 : i32
    return %c0_i32, %c0_i32_0 : i32, i32
  }
  func.func @transform_9(%arg0: i32) -> (i32, i32) {
    %c0_i32 = arith.constant 0 : i32
    %c0_i32_0 = arith.constant 0 : i32
    %c0_i32_1 = arith.constant 0 : i32
    return %c0_i32, %c0_i32_0 : i32, i32
  }
  func.func @transform_10(%arg0: i32) -> (i32, i32) {
    %c0_i32 = arith.constant 0 : i32
    %c0_i32_0 = arith.constant 0 : i32
    %c0_i32_1 = arith.constant 0 : i32
    return %c0_i32, %c0_i32_0 : i32, i32
  }
  func.func @transform_11(%arg0: i32) -> (i32, i32) {
    %c0_i32 = arith.constant 0 : i32
    %c0_i32_0 = arith.constant 0 : i32
    %c0_i32_1 = arith.constant 0 : i32
    return %c0_i32, %c0_i32_0 : i32, i32
  }
  func.func @transform_12(%arg0: i32) -> (i32, i32) {
    %c0_i32 = arith.constant 0 : i32
    %c0_i32_0 = arith.constant 0 : i32
    %c0_i32_1 = arith.constant 0 : i32
    return %c0_i32, %c0_i32_0 : i32, i32
  }
  func.func @transform_13(%arg0: i32) -> (i32, i32) {
    %c0_i32 = arith.constant 0 : i32
    %c0_i32_0 = arith.constant 0 : i32
    %c0_i32_1 = arith.constant 0 : i32
    return %c0_i32, %c0_i32_0 : i32, i32
  }
  func.func @transform_14(%arg0: i32) -> (i32, i32) {
    %c0_i32 = arith.constant 0 : i32
    %c0_i32_0 = arith.constant 0 : i32
    %c0_i32_1 = arith.constant 0 : i32
    return %c0_i32, %c0_i32_0 : i32, i32
  }
}

</mosaic_0001>

<llo_original>
// kernel: tpu_custom_call.1
$region0: #{tpu_custom_call.1}
  #allocation0 [shape = 'u32[]', space=smem, size = 0x4, offset = 0x4, fixed_abs, tag = 'smem constant byte address 0x4 - core index']
  #allocation1 [shape = 'u32[144,128]{1,0:T(1,128)}', space=vmem, size = 0x12000, scoped, tag = 'internal scratch']
  %s0 = inlined_call_operand.hbm [shape: f32[16,128], index: 0, kind: input, shape index: {}]
  %s1 = inlined_call_operand.hbm [shape: f32[16,16], index: 1, kind: input, shape index: {}]
  %s2 = inlined_call_operand.hbm [shape: bf16[128,128], index: 2, kind: input, shape index: {}]
  %s3 = inlined_call_operand.vmem [shape: f32[1,128], index: 3, kind: input, shape index: {}]
  %s4 = inlined_call_operand.hbm [shape: bf16[128,128], index: 4, kind: input, shape index: {}]
  %s5 = inlined_call_operand.vmem [shape: f32[1,128], index: 5, kind: input, shape index: {}]
  %s6 = inlined_call_operand.vmem [shape: f32[1,128], index: 6, kind: input, shape index: {}]
  %s7 = inlined_call_operand.vmem [shape: f32[1,128], index: 7, kind: input, shape index: {}]
  %s8 = inlined_call_operand.hbm [shape: bf16[128,512], index: 8, kind: input, shape index: {}]
  %s9 = inlined_call_operand.vmem [shape: f32[1,512], index: 9, kind: input, shape index: {}]
  %s10 = inlined_call_operand.hbm [shape: bf16[512,128], index: 10, kind: input, shape index: {}]
  %s11 = inlined_call_operand.vmem [shape: f32[1,128], index: 11, kind: input, shape index: {}]
  %s12 = inlined_call_operand.vmem [shape: f32[1,128], index: 12, kind: input, shape index: {}]
  %s13 = inlined_call_operand.vmem [shape: f32[1,128], index: 13, kind: input, shape index: {}]
  %s14 = inlined_call_operand.hbm [shape: f32[16,128], index: 14, kind: output, shape index: {}]
  %s15 = sld [smem:[#allocation0]]
  $region90: #{tpu_custom_call.1} parent=0
    _
  %s17 = ssub.s32 1, %s15
  %s18 = scalar_select 0, %s17, %s15
  $region1: #{tpu_custom_call.1} parent=0
    #allocation2 [shape = 'u8[8192]{0}', space=vmem, size = 0x2000, scoped, tag = 'input window, operand 0, single buffered']
    #allocation3 [shape = 's32[1]{0}', space=sflag, size = 0x4, scoped, tag = 'scoped memory for tpu_custom_call.1']
    #allocation4 [shape = 's32[1]{0}', space=sflag, size = 0x4, scoped, tag = 'scoped memory for tpu_custom_call.1']
    #allocation5 [shape = 'u8[8192]{0}', space=vmem, size = 0x2000, scoped, tag = 'input window, operand 1, single buffered']
    #allocation6 [shape = 's32[1]{0}', space=sflag, size = 0x4, scoped, tag = 'scoped memory for tpu_custom_call.1']
    #allocation7 [shape = 'u8[32768]{0}', space=vmem, size = 0x8000, scoped, tag = 'input window, operand 2, single buffered']
    #allocation8 [shape = 'u8[32768]{0}', space=vmem, size = 0x8000, scoped, tag = 'input window, operand 4, single buffered']
    #allocation9 [shape = 's32[1]{0}', space=sflag, size = 0x4, scoped, tag = 'scoped memory for tpu_custom_call.1']
    #allocation10 [shape = 'u8[131072]{0}', space=vmem, size = 0x20000, scoped, tag = 'input window, operand 8, single buffered']
    #allocation11 [shape = 'u8[131072]{0}', space=vmem, size = 0x20000, scoped, tag = 'input window, operand 10, single buffered']
    #allocation12 [shape = 's32[1]{0}', space=sflag, size = 0x4, scoped, tag = 'scoped memory for tpu_custom_call.1']
    #allocation13 [shape = 'u8[8192]{0}', space=vmem, size = 0x2000, scoped, tag = 'output window, operand 0, single buffered']
    %19 = vsyncpa [#allocation3], 0
    %20 = vsyncpa [#allocation6], 0
    %21 = vsyncpa [#allocation9], 0
    %22 = vsyncpa [#allocation12], 0
    %23 = vsyncpa [#allocation4], 0
    // Predicated region
    $region2: #{tpu_custom_call.1} parent=1 // pred_check
      _
    $region3: #{tpu_custom_call.1} parent=1 // pred_check_branch
      %25 = sbr.rel (0) target = $region5
    $region4: #{tpu_custom_call.1} parent=1 // pred_region
      %s27 = ssub.s32 256, 256
      %28 = vsyncadd [#allocation3], %s27
      %s29 = sshll.u32 [#allocation2], 4
      %s30 = int_to_ptr.vmem [resolvable:$true] %s29
      %35 = dma.hbm_to_vmem [thread:$0]  %s0, 256, %s30, [#allocation3], 128, 128, 8
    $region5: #{tpu_custom_call.1} parent=1 // pred_fallthru
      _
    // Predicated region
    $region6: #{tpu_custom_call.1} parent=1 // pred_check
      _
    $region7: #{tpu_custom_call.1} parent=1 // pred_check_branch
      %37 = sbr.rel (0) target = $region9
    $region8: #{tpu_custom_call.1} parent=1 // pred_region
      %s39 = ssub.s32 256, 256
      %40 = vsyncadd [#allocation6], %s39
      %s41 = sshll.u32 [#allocation5], 4
      %s42 = int_to_ptr.vmem [resolvable:$true] %s41
      %47 = dma.hbm_to_vmem [thread:$0]  %s1, 256, %s42, [#allocation6], 128, 128, 8
    $region9: #{tpu_custom_call.1} parent=1 // pred_fallthru
      _
    // Predicated region
    $region10: #{tpu_custom_call.1} parent=1 // pred_check
      _
    $region11: #{tpu_custom_call.1} parent=1 // pred_check_branch
      %49 = sbr.rel (0) target = $region13
    $region12: #{tpu_custom_call.1} parent=1 // pred_region
      %s51 = ssub.s32 1024, 1024
      %52 = vsyncadd [#allocation6], %s51
      %s53 = sshll.u32 [#allocation7], 4
      %s54 = int_to_ptr.vmem [resolvable:$true] %s53
      %59 = dma.hbm_to_vmem [thread:$0]  %s2, 1024, %s54, [#allocation6], 64, 64, 4
    $region13: #{tpu_custom_call.1} parent=1 // pred_fallthru
      _
    // Predicated region
    $region14: #{tpu_custom_call.1} parent=1 // pred_check
      _
    $region15: #{tpu_custom_call.1} parent=1 // pred_check_branch
      %61 = sbr.rel (0) target = $region17
    $region16: #{tpu_custom_call.1} parent=1 // pred_region
      _
    $region17: #{tpu_custom_call.1} parent=1 // pred_fallthru
      _
    // Predicated region
    $region18: #{tpu_custom_call.1} parent=1 // pred_check
      _
    $region19: #{tpu_custom_call.1} parent=1 // pred_check_branch
      %63 = sbr.rel (0) target = $region21
    $region20: #{tpu_custom_call.1} parent=1 // pred_region
      %s65 = ssub.s32 1024, 1024
      %66 = vsyncadd [#allocation9], %s65
      %s67 = sshll.u32 [#allocation8], 4
      %s68 = int_to_ptr.vmem [resolvable:$true] %s67
      %73 = dma.hbm_to_vmem [thread:$0]  %s4, 1024, %s68, [#allocation9], 64, 64, 4
    $region21: #{tpu_custom_call.1} parent=1 // pred_fallthru
      _
    // Predicated region
    $region22: #{tpu_custom_call.1} parent=1 // pred_check
      _
    $region23: #{tpu_custom_call.1} parent=1 // pred_check_branch
      %75 = sbr.rel (0) target = $region25
    $region24: #{tpu_custom_call.1} parent=1 // pred_region
      _
    $region25: #{tpu_custom_call.1} parent=1 // pred_fallthru
      _
    // Predicated region
    $region26: #{tpu_custom_call.1} parent=1 // pred_check
      _
    $region27: #{tpu_custom_call.1} parent=1 // pred_check_branch
      %77 = sbr.rel (0) target = $region29
    $region28: #{tpu_custom_call.1} parent=1 // pred_region
      _
    $region29: #{tpu_custom_call.1} parent=1 // pred_fallthru
      _
    // Predicated region
    $region30: #{tpu_custom_call.1} parent=1 // pred_check
      _
    $region31: #{tpu_custom_call.1} parent=1 // pred_check_branch
      %79 = sbr.rel (0) target = $region33
    $region32: #{tpu_custom_call.1} parent=1 // pred_region
      _
    $region33: #{tpu_custom_call.1} parent=1 // pred_fallthru
      _
    // Predicated region
    $region34: #{tpu_custom_call.1} parent=1 // pred_check
      _
    $region35: #{tpu_custom_call.1} parent=1 // pred_check_branch
      %81 = sbr.rel (0) target = $region37
    $region36: #{tpu_custom_call.1} parent=1 // pred_region
      %s83 = ssub.s32 4096, 4096
      %84 = vsyncadd [#allocation9], %s83
      %s85 = sshll.u32 [#allocation10], 4
      %s86 = int_to_ptr.vmem [resolvable:$true] %s85
      %91 = dma.hbm_to_vmem [thread:$0]  %s8, 4096, %s86, [#allocation9], 256, 256, 16
    $region37: #{tpu_custom_call.1} parent=1 // pred_fallthru
      _
    // Predicated region
    $region38: #{tpu_custom_call.1} parent=1 // pred_check
      _
    $region39: #{tpu_custom_call.1} parent=1 // pred_check_branch
      %93 = sbr.rel (0) target = $region41
    $region40: #{tpu_custom_call.1} parent=1 // pred_region
      _
    $region41: #{tpu_custom_call.1} parent=1 // pred_fallthru
      _
    // Predicated region
    $region42: #{tpu_custom_call.1} parent=1 // pred_check
      _
    $region43: #{tpu_custom_call.1} parent=1 // pred_check_branch
      %95 = sbr.rel (0) target = $region45
    $region44: #{tpu_custom_call.1} parent=1 // pred_region
      %s97 = ssub.s32 4096, 4096
      %98 = vsyncadd [#allocation12], %s97
      %s99 = sshll.u32 [#allocation11], 4
      %s100 = int_to_ptr.vmem [resolvable:$true] %s99
      %105 = dma.hbm_to_vmem [thread:$0]  %s10, 4096, %s100, [#allocation12], 64, 64, 4
    $region45: #{tpu_custom_call.1} parent=1 // pred_fallthru
      _
    // Predicated region
    $region46: #{tpu_custom_call.1} parent=1 // pred_check
      _
    $region47: #{tpu_custom_call.1} parent=1 // pred_check_branch
      %107 = sbr.rel (0) target = $region49
    $region48: #{tpu_custom_call.1} parent=1 // pred_region
      _
    $region49: #{tpu_custom_call.1} parent=1 // pred_fallthru
      _
    // Predicated region
    $region50: #{tpu_custom_call.1} parent=1 // pred_check
      _
    $region51: #{tpu_custom_call.1} parent=1 // pred_check_branch
      %109 = sbr.rel (0) target = $region53
    $region52: #{tpu_custom_call.1} parent=1 // pred_region
      _
    $region53: #{tpu_custom_call.1} parent=1 // pred_fallthru
      _
    // Predicated region
    $region54: #{tpu_custom_call.1} parent=1 // pred_check
      _
    $region55: #{tpu_custom_call.1} parent=1 // pred_check_branch
      %111 = sbr.rel (0) target = $region57
    $region56: #{tpu_custom_call.1} parent=1 // pred_region
      _
    $region57: #{tpu_custom_call.1} parent=1 // pred_fallthru
      _
    // Predicated region
    $region58: #{tpu_custom_call.1} parent=1 // pred_check
      _
    $region59: #{tpu_custom_call.1} parent=1 // pred_check_branch
      %113 = sbr.rel (0) target = $region61
    $region60: #{tpu_custom_call.1} parent=1 // pred_region
      %114 = dma.done [#allocation3], 256
    $region61: #{tpu_custom_call.1} parent=1 // pred_fallthru
      _
    // Predicated region
    $region62: #{tpu_custom_call.1} parent=1 // pred_check
      _
    $region63: #{tpu_custom_call.1} parent=1 // pred_check_branch
      %116 = sbr.rel (0) target = $region65
    $region64: #{tpu_custom_call.1} parent=1 // pred_region
      %117 = dma.done [#allocation6], 256
    $region65: #{tpu_custom_call.1} parent=1 // pred_fallthru
      _
    // Predicated region
    $region66: #{tpu_custom_call.1} parent=1 // pred_check
      _
    $region67: #{tpu_custom_call.1} parent=1 // pred_check_branch
      %119 = sbr.rel (0) target = $region69
    $region68: #{tpu_custom_call.1} parent=1 // pred_region
      %120 = dma.done [#allocation6], 1024
    $region69: #{tpu_custom_call.1} parent=1 // pred_fallthru
      _
    // Predicated region
    $region70: #{tpu_custom_call.1} parent=1 // pred_check
      _
    $region71: #{tpu_custom_call.1} parent=1 // pred_check_branch
      %122 = sbr.rel (0) target = $region73
    $region72: #{tpu_custom_call.1} parent=1 // pred_region
      %123 = dma.done [#allocation9], 1024
    $region73: #{tpu_custom_call.1} parent=1 // pred_fallthru
      _
    // Predicated region
    $region74: #{tpu_custom_call.1} parent=1 // pred_check
      _
    $region75: #{tpu_custom_call.1} parent=1 // pred_check_branch
      %125 = sbr.rel (0) target = $region77
    $region76: #{tpu_custom_call.1} parent=1 // pred_region
      %126 = dma.done [#allocation9], 4096
    $region77: #{tpu_custom_call.1} parent=1 // pred_fallthru
      _
    // Predicated region
    $region78: #{tpu_custom_call.1} parent=1 // pred_check
      _
    $region79: #{tpu_custom_call.1} parent=1 // pred_check_branch
      %128 = sbr.rel (0) target = $region81
    $region80: #{tpu_custom_call.1} parent=1 // pred_region
      %129 = dma.done [#allocation12], 4096
    $region81: #{tpu_custom_call.1} parent=1 // pred_fallthru
      _
    %v131 = vld [vmem:[#allocation2] sm:$0xff]
    %v132 = vld [vmem:[#allocation2 + $0x8] sm:$0xff]
    %v133 = vld [vmem:[#allocation7] sm:$0xf]
    %v134 = vld [vmem:[#allocation7 + $0x4] sm:$0xf]
    %v135 = vld [vmem:[#allocation7 + $0x8] sm:$0xf]
    %v136 = vld [vmem:[#allocation7 + $0xc] sm:$0xf]
    %v137 = vld [vmem:[#allocation7 + $0x10] sm:$0xf]
    %v138 = vld [vmem:[#allocation7 + $0x14] sm:$0xf]
    %v139 = vld [vmem:[#allocation7 + $0x18] sm:$0xf]
    %v140 = vld [vmem:[#allocation7 + $0x1c] sm:$0xf]
    %v141 = vld [vmem:[#allocation7 + $0x20] sm:$0xf]
    %v142 = vld [vmem:[#allocation7 + $0x24] sm:$0xf]
    %v143 = vld [vmem:[#allocation7 + $0x28] sm:$0xf]
    %v144 = vld [vmem:[#allocation7 + $0x2c] sm:$0xf]
    %v145 = vld [vmem:[#allocation7 + $0x30] sm:$0xf]
    %v146 = vld [vmem:[#allocation7 + $0x34] sm:$0xf]
    %v147 = vld [vmem:[#allocation7 + $0x38] sm:$0xf]
    %v148 = vld [vmem:[#allocation7 + $0x3c] sm:$0xf]
    %v149 = vpack.c.bf16 %v132, %v131
    %v150 = vld [vmem:[%s3] sm:$0x1]
    %v152 = vlaneseq
    %v153 = vshrl.u32 %v152, 7
    %v154 = vsub.s32 0, %v153
    %v155 = vrot.slane %v150, %v154
    %v173 = vunpack.c.l.b16 %v133
    %v174 = vunpack.c.l.b16 %v134
    %v175 = vunpack.c.l.b16 %v135
    %v176 = vunpack.c.l.b16 %v136
    %v177 = vunpack.c.l.b16 %v137
    %v178 = vunpack.c.l.b16 %v138
    %v179 = vunpack.c.l.b16 %v139
    %v180 = vunpack.c.l.b16 %v140
    %v181 = vunpack.c.l.b16 %v141
    %v182 = vunpack.c.l.b16 %v142
    %v183 = vunpack.c.l.b16 %v143
    %v184 = vunpack.c.l.b16 %v144
    %v185 = vunpack.c.l.b16 %v145
    %v186 = vunpack.c.l.b16 %v146
    %v187 = vunpack.c.l.b16 %v147
    %v188 = vunpack.c.l.b16 %v148
    %v189 = vpack.c.b16 %v174, %v173
    %v190 = vpack.c.b16 %v176, %v175
    %v191 = vpack.c.b16 %v178, %v177
    %v192 = vpack.c.b16 %v180, %v179
    %v193 = vpack.c.b16 %v182, %v181
    %v194 = vpack.c.b16 %v184, %v183
    %v195 = vpack.c.b16 %v186, %v185
    %v196 = vpack.c.b16 %v188, %v187
    %205 = vmatprep.subr.bf16.mxu0 0
    %206 = vmatpush1.bf16.msra.mxu0 %v196
    %207 = vmatprep.subr.bf16.mxu0 0
    %208 = vmatpush1.bf16.msra.mxu0 %v195
    %209 = vmatprep.subr.bf16.mxu0 0
    %210 = vmatpush1.bf16.msra.mxu0 %v194
    %211 = vmatprep.subr.bf16.mxu0 0
    %212 = vmatpush1.bf16.msra.mxu0 %v193
    %213 = vmatprep.subr.bf16.mxu0 0
    %214 = vmatpush1.bf16.msra.mxu0 %v192
    %215 = vmatprep.subr.bf16.mxu0 0
    %216 = vmatpush1.bf16.msra.mxu0 %v191
    %217 = vmatprep.subr.bf16.mxu0 0
    %218 = vmatpush1.bf16.msra.mxu0 %v190
    %219 = vmatprep.subr.bf16.mxu0 0
    %220 = vmatpush1.bf16.msra.mxu0 %v189
    %221 = vmatprep.subr.bf16.mxu0 0
    %222 = vmatpush2.bf16.msra.mxu0 0
    %223 = vmatprep.subr.bf16.mxu0 0
    %224 = vmatpush2.bf16.msra.mxu0 0
    %225 = vmatprep.subr.bf16.mxu0 0
    %226 = vmatpush2.bf16.msra.mxu0 0
    %227 = vmatprep.subr.bf16.mxu0 0
    %228 = vmatpush2.bf16.msra.mxu0 0
    %229 = vmatprep.subr.bf16.mxu0 0
    %230 = vmatpush2.bf16.msra.mxu0 0
    %231 = vmatprep.subr.bf16.mxu0 0
    %232 = vmatpush2.bf16.msra.mxu0 0
    %233 = vmatprep.subr.bf16.mxu0 0
    %234 = vmatpush2.bf16.msra.mxu0 0
    %235 = vmatprep.subr.bf16.mxu0 0
    %236 = vmatpush2.bf16.msra.mxu0 0
    %237 = vmatprep.mubr.bf16.mxu0 0
    %238 = vmatmul.mubr.bf16.gmra.mxu0 %v149
    %v239 = vpop.f32.mrf.mxu0
    %v240 = vadd.f32 %v155, %v239
    %v241 = vpop.f32.mrf.mxu0
    %v242 = vpop.f32.mrf.mxu0
    %v243 = vadd.f32 %v155, %v242
    %v244 = vpop.f32.mrf.mxu0
    %245 = vdwg.mxu0
    %248 = vrot.lane.b32.xlu0 %v240, 96
    %v249 = vpop.permute.xlu0 %248
    %250 = vrot.lane.b32.xlu0 %v243, 96
    %v251 = vpop.permute.xlu0 %250
    %254 = vrot.lane.b32.xlu0 %v240, 64
    %v255 = vpop.permute.xlu0 %254
    %256 = vrot.lane.b32.xlu0 %v243, 64
    %v257 = vpop.permute.xlu0 %256
    %260 = vrot.lane.b32.xlu0 %v240, 32
    %v261 = vpop.permute.xlu0 %260
    %262 = vrot.lane.b32.xlu0 %v243, 32
    %v263 = vpop.permute.xlu0 %262
    %v266 = vmul.f32 %v240, 0.17677669
    %v267 = vmul.f32 %v243, 0.17677669
    %v268 = vmul.f32 %v249, 0.17677669
    %v269 = vmul.f32 %v251, 0.17677669
    %v270 = vmul.f32 %v255, 0.17677669
    %v271 = vmul.f32 %v257, 0.17677669
    %v272 = vmul.f32 %v261, 0.17677669
    %v273 = vmul.f32 %v263, 0.17677669
    %v274 = vpack.c.bf16 %v267, %v266
    %v275 = vpack.c.bf16 %v269, %v268
    %v276 = vpack.c.bf16 %v271, %v270
    %v277 = vpack.c.bf16 %v273, %v272
    %v278 = vpack.c.bf16 %v243, %v240
    %v279 = vpack.c.bf16 %v251, %v249
    %v280 = vpack.c.bf16 %v257, %v255
    %v281 = vpack.c.bf16 %v263, %v261
    %v282 = vld [vmem:[#allocation5] sm:$0xff]
    %v283 = vld [vmem:[#allocation5 + $0x8] sm:$0xff]
    %vm284 = vcmask 261120
    %v286 = vsel %vm284, %v274, 0
    %v289 = vsel %vm284, %v278, 0
    %291 = vmatprep.subr.bf16.mxu0 0
    %292 = vmatpush1.bf16.xpose.msra.mxu0 0
    %293 = vmatprep.subr.bf16.mxu0 0
    %294 = vmatpush1.bf16.xpose.msra.mxu0 0
    %295 = vmatprep.subr.bf16.mxu0 0
    %296 = vmatpush1.bf16.xpose.msra.mxu0 0
    %297 = vmatprep.subr.bf16.mxu0 0
    %298 = vmatpush1.bf16.xpose.msra.mxu0 0
    %299 = vmatprep.subr.bf16.mxu0 0
    %300 = vmatpush1.bf16.xpose.msra.mxu0 0
    %301 = vmatprep.subr.bf16.mxu0 0
    %302 = vmatpush1.bf16.xpose.msra.mxu0 0
    %303 = vmatprep.subr.bf16.mxu0 0
    %304 = vmatpush1.bf16.xpose.msra.mxu0 0
    %305 = vmatprep.subr.bf16.mxu0 0
    %306 = vmatpush1.bf16.xpose.msra.mxu0 %v289
    %307 = vmatprep.subr.bf16.mxu0 0
    %308 = vmatpush2.bf16.xpose.msra.mxu0 0
    %309 = vmatprep.subr.bf16.mxu0 0
    %310 = vmatpush2.bf16.xpose.msra.mxu0 0
    %311 = vmatprep.subr.bf16.mxu0 0
    %312 = vmatpush2.bf16.xpose.msra.mxu0 0
    %313 = vmatprep.subr.bf16.mxu0 0
    %314 = vmatpush2.bf16.xpose.msra.mxu0 0
    %315 = vmatprep.subr.bf16.mxu0 0
    %316 = vmatpush2.bf16.xpose.msra.mxu0 0
    %317 = vmatprep.subr.bf16.mxu0 0
    %318 = vmatpush2.bf16.xpose.msra.mxu0 0
    %319 = vmatprep.subr.bf16.mxu0 0
    %320 = vmatpush2.bf16.xpose.msra.mxu0 0
    %321 = vmatprep.subr.bf16.mxu0 0
    %322 = vmatpush2.bf16.xpose.msra.mxu0 0
    %323 = vmatprep.mubr.bf16.mxu0 0
    %324 = vmatmul.mubr.bf16.gmra.mxu0 %v286
    %v325 = vpop.f32.mrf.mxu0
    %v326 = vadd.f32 %v282, %v325
    %v327 = vpop.f32.mrf.mxu0
    %v328 = vpop.f32.mrf.mxu0
    %v329 = vadd.f32 %v283, %v328
    %v330 = vpop.f32.mrf.mxu0
    %331 = vdwg.mxu0
    %v333 = vsel %vm284, %v275, 0
    %v336 = vsel %vm284, %v279, 0
    %338 = vmatprep.subr.bf16.mxu0 0
    %339 = vmatpush1.bf16.xpose.msra.mxu0 0
    %340 = vmatprep.subr.bf16.mxu0 0
    %341 = vmatpush1.bf16.xpose.msra.mxu0 0
    %342 = vmatprep.subr.bf16.mxu0 0
    %343 = vmatpush1.bf16.xpose.msra.mxu0 0
    %344 = vmatprep.subr.bf16.mxu0 0
    %345 = vmatpush1.bf16.xpose.msra.mxu0 0
    %346 = vmatprep.subr.bf16.mxu0 0
    %347 = vmatpush1.bf16.xpose.msra.mxu0 0
    %348 = vmatprep.subr.bf16.mxu0 0
    %349 = vmatpush1.bf16.xpose.msra.mxu0 0
    %350 = vmatprep.subr.bf16.mxu0 0
    %351 = vmatpush1.bf16.xpose.msra.mxu0 0
    %352 = vmatprep.subr.bf16.mxu0 0
    %353 = vmatpush1.bf16.xpose.msra.mxu0 %v336
    %354 = vmatprep.subr.bf16.mxu0 0
    %355 = vmatpush2.bf16.xpose.msra.mxu0 0
    %356 = vmatprep.subr.bf16.mxu0 0
    %357 = vmatpush2.bf16.xpose.msra.mxu0 0
    %358 = vmatprep.subr.bf16.mxu0 0
    %359 = vmatpush2.bf16.xpose.msra.mxu0 0
    %360 = vmatprep.subr.bf16.mxu0 0
    %361 = vmatpush2.bf16.xpose.msra.mxu0 0
    %362 = vmatprep.subr.bf16.mxu0 0
    %363 = vmatpush2.bf16.xpose.msra.mxu0 0
    %364 = vmatprep.subr.bf16.mxu0 0
    %365 = vmatpush2.bf16.xpose.msra.mxu0 0
    %366 = vmatprep.subr.bf16.mxu0 0
    %367 = vmatpush2.bf16.xpose.msra.mxu0 0
    %368 = vmatprep.subr.bf16.mxu0 0
    %369 = vmatpush2.bf16.xpose.msra.mxu0 0
    %370 = vmatprep.mubr.bf16.mxu0 0
    %371 = vmatmul.mubr.bf16.gmra.mxu0 %v333
    %v372 = vpop.f32.mrf.mxu0
    %v373 = vadd.f32 %v282, %v372
    %v374 = vpop.f32.mrf.mxu0
    %v375 = vpop.f32.mrf.mxu0
    %v376 = vadd.f32 %v283, %v375
    %v377 = vpop.f32.mrf.mxu0
    %378 = vdwg.mxu0
    %v380 = vsel %vm284, %v276, 0
    %v383 = vsel %vm284, %v280, 0
    %385 = vmatprep.subr.bf16.mxu0 0
    %386 = vmatpush1.bf16.xpose.msra.mxu0 0
    %387 = vmatprep.subr.bf16.mxu0 0
    %388 = vmatpush1.bf16.xpose.msra.mxu0 0
    %389 = vmatprep.subr.bf16.mxu0 0
    %390 = vmatpush1.bf16.xpose.msra.mxu0 0
    %391 = vmatprep.subr.bf16.mxu0 0
    %392 = vmatpush1.bf16.xpose.msra.mxu0 0
    %393 = vmatprep.subr.bf16.mxu0 0
    %394 = vmatpush1.bf16.xpose.msra.mxu0 0
    %395 = vmatprep.subr.bf16.mxu0 0
    %396 = vmatpush1.bf16.xpose.msra.mxu0 0
    %397 = vmatprep.subr.bf16.mxu0 0
    %398 = vmatpush1.bf16.xpose.msra.mxu0 0
    %399 = vmatprep.subr.bf16.mxu0 0
    %400 = vmatpush1.bf16.xpose.msra.mxu0 %v383
    %401 = vmatprep.subr.bf16.mxu0 0
    %402 = vmatpush2.bf16.xpose.msra.mxu0 0
    %403 = vmatprep.subr.bf16.mxu0 0
    %404 = vmatpush2.bf16.xpose.msra.mxu0 0
    %405 = vmatprep.subr.bf16.mxu0 0
    %406 = vmatpush2.bf16.xpose.msra.mxu0 0
    %407 = vmatprep.subr.bf16.mxu0 0
    %408 = vmatpush2.bf16.xpose.msra.mxu0 0
    %409 = vmatprep.subr.bf16.mxu0 0
    %410 = vmatpush2.bf16.xpose.msra.mxu0 0
    %411 = vmatprep.subr.bf16.mxu0 0
    %412 = vmatpush2.bf16.xpose.msra.mxu0 0
    %413 = vmatprep.subr.bf16.mxu0 0
    %414 = vmatpush2.bf16.xpose.msra.mxu0 0
    %415 = vmatprep.subr.bf16.mxu0 0
    %416 = vmatpush2.bf16.xpose.msra.mxu0 0
    %417 = vmatprep.mubr.bf16.mxu0 0
    %418 = vmatmul.mubr.bf16.gmra.mxu0 %v380
    %v419 = vpop.f32.mrf.mxu0
    %v420 = vadd.f32 %v282, %v419
    %v421 = vpop.f32.mrf.mxu0
    %v422 = vpop.f32.mrf.mxu0
    %v423 = vadd.f32 %v283, %v422
    %v424 = vpop.f32.mrf.mxu0
    %425 = vdwg.mxu0
    %v427 = vsel %vm284, %v277, 0
    %v430 = vsel %vm284, %v281, 0
    %432 = vmatprep.subr.bf16.mxu0 0
    %433 = vmatpush1.bf16.xpose.msra.mxu0 0
    %434 = vmatprep.subr.bf16.mxu0 0
    %435 = vmatpush1.bf16.xpose.msra.mxu0 0
    %436 = vmatprep.subr.bf16.mxu0 0
    %437 = vmatpush1.bf16.xpose.msra.mxu0 0
    %438 = vmatprep.subr.bf16.mxu0 0
    %439 = vmatpush1.bf16.xpose.msra.mxu0 0
    %440 = vmatprep.subr.bf16.mxu0 0
    %441 = vmatpush1.bf16.xpose.msra.mxu0 0
    %442 = vmatprep.subr.bf16.mxu0 0
    %443 = vmatpush1.bf16.xpose.msra.mxu0 0
    %444 = vmatprep.subr.bf16.mxu0 0
    %445 = vmatpush1.bf16.xpose.msra.mxu0 0
    %446 = vmatprep.subr.bf16.mxu0 0
    %447 = vmatpush1.bf16.xpose.msra.mxu0 %v430
    %448 = vmatprep.subr.bf16.mxu0 0
    %449 = vmatpush2.bf16.xpose.msra.mxu0 0
    %450 = vmatprep.subr.bf16.mxu0 0
    %451 = vmatpush2.bf16.xpose.msra.mxu0 0
    %452 = vmatprep.subr.bf16.mxu0 0
    %453 = vmatpush2.bf16.xpose.msra.mxu0 0
    %454 = vmatprep.subr.bf16.mxu0 0
    %455 = vmatpush2.bf16.xpose.msra.mxu0 0
    %456 = vmatprep.subr.bf16.mxu0 0
    %457 = vmatpush2.bf16.xpose.msra.mxu0 0
    %458 = vmatprep.subr.bf16.mxu0 0
    %459 = vmatpush2.bf16.xpose.msra.mxu0 0
    %460 = vmatprep.subr.bf16.mxu0 0
    %461 = vmatpush2.bf16.xpose.msra.mxu0 0
    %462 = vmatprep.subr.bf16.mxu0 0
    %463 = vmatpush2.bf16.xpose.msra.mxu0 0
    %464 = vmatprep.mubr.bf16.mxu0 0
    %465 = vmatmul.mubr.bf16.gmra.mxu0 %v427
    %v466 = vpop.f32.mrf.mxu0
    %v467 = vadd.f32 %v282, %v466
    %v468 = vpop.f32.mrf.mxu0
    %v469 = vpop.f32.mrf.mxu0
    %v470 = vadd.f32 %v283, %v469
    %v471 = vpop.f32.mrf.mxu0
    %472 = vdwg.mxu0
    %vm473 = vcmask 130048
    %v474 = vsel %vm473, %v326, -inf
    %475 = vmax.xlane.f32.xlu0 %v474
    %v476 = vpop.xlane.xlu0 %475
    %v477 = vsel %vm473, %v329, -inf
    %478 = vmax.xlane.f32.xlu0 %v477
    %v479 = vpop.xlane.xlu0 %478
    %v480 = vsel %vm473, %v373, -inf
    %481 = vmax.xlane.f32.xlu0 %v480
    %v482 = vpop.xlane.xlu0 %481
    %v483 = vsel %vm473, %v376, -inf
    %484 = vmax.xlane.f32.xlu0 %v483
    %v485 = vpop.xlane.xlu0 %484
    %v486 = vsel %vm473, %v420, -inf
    %487 = vmax.xlane.f32.xlu0 %v486
    %v488 = vpop.xlane.xlu0 %487
    %v489 = vsel %vm473, %v423, -inf
    %490 = vmax.xlane.f32.xlu0 %v489
    %v491 = vpop.xlane.xlu0 %490
    %v492 = vsel %vm473, %v467, -inf
    %493 = vmax.xlane.f32.xlu0 %v492
    %v494 = vpop.xlane.xlu0 %493
    %v495 = vsel %vm473, %v470, -inf
    %496 = vmax.xlane.f32.xlu0 %v495
    %v497 = vpop.xlane.xlu0 %496
    %v498 = vsub.f32 %v326, %v476
    %v499 = vsub.f32 %v329, %v479
    %v500 = vsub.f32 %v373, %v482
    %v501 = vsub.f32 %v376, %v485
    %v502 = vsub.f32 %v420, %v488
    %v503 = vsub.f32 %v423, %v491
    %v504 = vsub.f32 %v467, %v494
    %v505 = vsub.f32 %v470, %v497
    %v506 = vmul.f32 %v498, 1.442695
    %v507 = vpow.pop %v506
    %v508 = vmul.f32 %v499, 1.442695
    %v509 = vpow.pop %v508
    %v510 = vmul.f32 %v500, 1.442695
    %v511 = vpow.pop %v510
    %v512 = vmul.f32 %v501, 1.442695
    %v513 = vpow.pop %v512
    %v514 = vmul.f32 %v502, 1.442695
    %v515 = vpow.pop %v514
    %v516 = vmul.f32 %v503, 1.442695
    %v517 = vpow.pop %v516
    %v518 = vmul.f32 %v504, 1.442695
    %v519 = vpow.pop %v518
    %v520 = vmul.f32 %v505, 1.442695
    %v521 = vpow.pop %v520
    %v522 = vsel %vm473, %v507, 0.0
    %523 = vadd.xlane.f32.xlu0 %v522
    %v524 = vpop.xlane.xlu0 %523
    %v525 = vsel %vm473, %v509, 0.0
    %526 = vadd.xlane.f32.xlu0 %v525
    %v527 = vpop.xlane.xlu0 %526
    %v528 = vsel %vm473, %v511, 0.0
    %529 = vadd.xlane.f32.xlu0 %v528
    %v530 = vpop.xlane.xlu0 %529
    %v531 = vsel %vm473, %v513, 0.0
    %532 = vadd.xlane.f32.xlu0 %v531
    %v533 = vpop.xlane.xlu0 %532
    %v534 = vsel %vm473, %v515, 0.0
    %535 = vadd.xlane.f32.xlu0 %v534
    %v536 = vpop.xlane.xlu0 %535
    %v537 = vsel %vm473, %v517, 0.0
    %538 = vadd.xlane.f32.xlu0 %v537
    %v539 = vpop.xlane.xlu0 %538
    %v540 = vsel %vm473, %v519, 0.0
    %541 = vadd.xlane.f32.xlu0 %v540
    %v542 = vpop.xlane.xlu0 %541
    %v543 = vsel %vm473, %v521, 0.0
    %544 = vadd.xlane.f32.xlu0 %v543
    %v545 = vpop.xlane.xlu0 %544
    %v546 = vrcp.pop %v524
    %v547 = vrcp.pop %v527
    %v548 = vrcp.pop %v530
    %v549 = vrcp.pop %v533
    %v550 = vrcp.pop %v536
    %v551 = vrcp.pop %v539
    %v552 = vrcp.pop %v542
    %v553 = vrcp.pop %v545
    %v554 = vmul.f32 %v507, %v546
    %v555 = vmul.f32 %v509, %v547
    %v556 = vmul.f32 %v511, %v548
    %v557 = vmul.f32 %v513, %v549
    %v558 = vmul.f32 %v515, %v550
    %v559 = vmul.f32 %v517, %v551
    %v560 = vmul.f32 %v519, %v552
    %v561 = vmul.f32 %v521, %v553
    %v562 = vpack.c.bf16 %v555, %v554
    %v563 = vpack.c.bf16 %v557, %v556
    %v564 = vpack.c.bf16 %v559, %v558
    %v565 = vpack.c.bf16 %v561, %v560
    %v567 = vsel %vm473, %v562, 0
    %569 = vmatprep.subr.bf16.mxu0 0
    %570 = vmatpush1.bf16.msra.mxu0 0
    %571 = vmatprep.subr.bf16.mxu0 0
    %572 = vmatpush1.bf16.msra.mxu0 0
    %573 = vmatprep.subr.bf16.mxu0 0
    %574 = vmatpush1.bf16.msra.mxu0 0
    %575 = vmatprep.subr.bf16.mxu0 0
    %576 = vmatpush1.bf16.msra.mxu0 0
    %577 = vmatprep.subr.bf16.mxu0 0
    %578 = vmatpush1.bf16.msra.mxu0 0
    %579 = vmatprep.subr.bf16.mxu0 0
    %580 = vmatpush1.bf16.msra.mxu0 0
    %581 = vmatprep.subr.bf16.mxu0 0
    %582 = vmatpush1.bf16.msra.mxu0 0
    %583 = vmatprep.subr.bf16.mxu0 0
    %584 = vmatpush1.bf16.msra.mxu0 %v278
    %585 = vmatprep.subr.bf16.mxu0 0
    %586 = vmatpush2.bf16.msra.mxu0 0
    %587 = vmatprep.subr.bf16.mxu0 0
    %588 = vmatpush2.bf16.msra.mxu0 0
    %589 = vmatprep.subr.bf16.mxu0 0
    %590 = vmatpush2.bf16.msra.mxu0 0
    %591 = vmatprep.subr.bf16.mxu0 0
    %592 = vmatpush2.bf16.msra.mxu0 0
    %593 = vmatprep.subr.bf16.mxu0 0
    %594 = vmatpush2.bf16.msra.mxu0 0
    %595 = vmatprep.subr.bf16.mxu0 0
    %596 = vmatpush2.bf16.msra.mxu0 0
    %597 = vmatprep.subr.bf16.mxu0 0
    %598 = vmatpush2.bf16.msra.mxu0 0
    %599 = vmatprep.subr.bf16.mxu0 0
    %600 = vmatpush2.bf16.msra.mxu0 0
    %601 = vmatprep.mubr.bf16.mxu0 0
    %602 = vmatmul.mubr.bf16.gmra.mxu0 %v567
    %v603 = vpop.f32.mrf.mxu0
    %v604 = vadd.f32 0.0, %v603
    %v605 = vpop.f32.mrf.mxu0
    %v606 = vpop.f32.mrf.mxu0
    %v607 = vadd.f32 0.0, %v606
    %v608 = vpop.f32.mrf.mxu0
    %609 = vdwg.mxu0
    %v611 = vsel %vm473, %v563, 0
    %613 = vmatprep.subr.bf16.mxu0 0
    %614 = vmatpush1.bf16.msra.mxu0 0
    %615 = vmatprep.subr.bf16.mxu0 0
    %616 = vmatpush1.bf16.msra.mxu0 0
    %617 = vmatprep.subr.bf16.mxu0 0
    %618 = vmatpush1.bf16.msra.mxu0 0
    %619 = vmatprep.subr.bf16.mxu0 0
    %620 = vmatpush1.bf16.msra.mxu0 0
    %621 = vmatprep.subr.bf16.mxu0 0
    %622 = vmatpush1.bf16.msra.mxu0 0
    %623 = vmatprep.subr.bf16.mxu0 0
    %624 = vmatpush1.bf16.msra.mxu0 0
    %625 = vmatprep.subr.bf16.mxu0 0
    %626 = vmatpush1.bf16.msra.mxu0 0
    %627 = vmatprep.subr.bf16.mxu0 0
    %628 = vmatpush1.bf16.msra.mxu0 %v279
    %629 = vmatprep.subr.bf16.mxu0 0
    %630 = vmatpush2.bf16.msra.mxu0 0
    %631 = vmatprep.subr.bf16.mxu0 0
    %632 = vmatpush2.bf16.msra.mxu0 0
    %633 = vmatprep.subr.bf16.mxu0 0
    %634 = vmatpush2.bf16.msra.mxu0 0
    %635 = vmatprep.subr.bf16.mxu0 0
    %636 = vmatpush2.bf16.msra.mxu0 0
    %637 = vmatprep.subr.bf16.mxu0 0
    %638 = vmatpush2.bf16.msra.mxu0 0
    %639 = vmatprep.subr.bf16.mxu0 0
    %640 = vmatpush2.bf16.msra.mxu0 0
    %641 = vmatprep.subr.bf16.mxu0 0
    %642 = vmatpush2.bf16.msra.mxu0 0
    %643 = vmatprep.subr.bf16.mxu0 0
    %644 = vmatpush2.bf16.msra.mxu0 0
    %645 = vmatprep.mubr.bf16.mxu0 0
    %646 = vmatmul.mubr.bf16.gmra.mxu0 %v611
    %v647 = vpop.f32.mrf.mxu0
    %v648 = vadd.f32 0.0, %v647
    %v649 = vpop.f32.mrf.mxu0
    %v650 = vpop.f32.mrf.mxu0
    %v651 = vadd.f32 0.0, %v650
    %v652 = vpop.f32.mrf.mxu0
    %653 = vdwg.mxu0
    %v655 = vsel %vm473, %v564, 0
    %657 = vmatprep.subr.bf16.mxu0 0
    %658 = vmatpush1.bf16.msra.mxu0 0
    %659 = vmatprep.subr.bf16.mxu0 0
    %660 = vmatpush1.bf16.msra.mxu0 0
    %661 = vmatprep.subr.bf16.mxu0 0
    %662 = vmatpush1.bf16.msra.mxu0 0
    %663 = vmatprep.subr.bf16.mxu0 0
    %664 = vmatpush1.bf16.msra.mxu0 0
    %665 = vmatprep.subr.bf16.mxu0 0
    %666 = vmatpush1.bf16.msra.mxu0 0
    %667 = vmatprep.subr.bf16.mxu0 0
    %668 = vmatpush1.bf16.msra.mxu0 0
    %669 = vmatprep.subr.bf16.mxu0 0
    %670 = vmatpush1.bf16.msra.mxu0 0
    %671 = vmatprep.subr.bf16.mxu0 0
    %672 = vmatpush1.bf16.msra.mxu0 %v280
    %673 = vmatprep.subr.bf16.mxu0 0
    %674 = vmatpush2.bf16.msra.mxu0 0
    %675 = vmatprep.subr.bf16.mxu0 0
    %676 = vmatpush2.bf16.msra.mxu0 0
    %677 = vmatprep.subr.bf16.mxu0 0
    %678 = vmatpush2.bf16.msra.mxu0 0
    %679 = vmatprep.subr.bf16.mxu0 0
    %680 = vmatpush2.bf16.msra.mxu0 0
    %681 = vmatprep.subr.bf16.mxu0 0
    %682 = vmatpush2.bf16.msra.mxu0 0
    %683 = vmatprep.subr.bf16.mxu0 0
    %684 = vmatpush2.bf16.msra.mxu0 0
    %685 = vmatprep.subr.bf16.mxu0 0
    %686 = vmatpush2.bf16.msra.mxu0 0
    %687 = vmatprep.subr.bf16.mxu0 0
    %688 = vmatpush2.bf16.msra.mxu0 0
    %689 = vmatprep.mubr.bf16.mxu0 0
    %690 = vmatmul.mubr.bf16.gmra.mxu0 %v655
    %v691 = vpop.f32.mrf.mxu0
    %v692 = vadd.f32 0.0, %v691
    %v693 = vpop.f32.mrf.mxu0
    %v694 = vpop.f32.mrf.mxu0
    %v695 = vadd.f32 0.0, %v694
    %v696 = vpop.f32.mrf.mxu0
    %697 = vdwg.mxu0
    %v699 = vsel %vm473, %v565, 0
    %701 = vmatprep.subr.bf16.mxu0 0
    %702 = vmatpush1.bf16.msra.mxu0 0
    %703 = vmatprep.subr.bf16.mxu0 0
    %704 = vmatpush1.bf16.msra.mxu0 0
    %705 = vmatprep.subr.bf16.mxu0 0
    %706 = vmatpush1.bf16.msra.mxu0 0
    %707 = vmatprep.subr.bf16.mxu0 0
    %708 = vmatpush1.bf16.msra.mxu0 0
    %709 = vmatprep.subr.bf16.mxu0 0
    %710 = vmatpush1.bf16.msra.mxu0 0
    %711 = vmatprep.subr.bf16.mxu0 0
    %712 = vmatpush1.bf16.msra.mxu0 0
    %713 = vmatprep.subr.bf16.mxu0 0
    %714 = vmatpush1.bf16.msra.mxu0 0
    %715 = vmatprep.subr.bf16.mxu0 0
    %716 = vmatpush1.bf16.msra.mxu0 %v281
    %717 = vmatprep.subr.bf16.mxu0 0
    %718 = vmatpush2.bf16.msra.mxu0 0
    %719 = vmatprep.subr.bf16.mxu0 0
    %720 = vmatpush2.bf16.msra.mxu0 0
    %721 = vmatprep.subr.bf16.mxu0 0
    %722 = vmatpush2.bf16.msra.mxu0 0
    %723 = vmatprep.subr.bf16.mxu0 0
    %724 = vmatpush2.bf16.msra.mxu0 0
    %725 = vmatprep.subr.bf16.mxu0 0
    %726 = vmatpush2.bf16.msra.mxu0 0
    %727 = vmatprep.subr.bf16.mxu0 0
    %728 = vmatpush2.bf16.msra.mxu0 0
    %729 = vmatprep.subr.bf16.mxu0 0
    %730 = vmatpush2.bf16.msra.mxu0 0
    %731 = vmatprep.subr.bf16.mxu0 0
    %732 = vmatpush2.bf16.msra.mxu0 0
    %733 = vmatprep.mubr.bf16.mxu0 0
    %734 = vmatmul.mubr.bf16.gmra.mxu0 %v699
    %v735 = vpop.f32.mrf.mxu0
    %v736 = vadd.f32 0.0, %v735
    %v737 = vpop.f32.mrf.mxu0
    %v738 = vpop.f32.mrf.mxu0
    %v739 = vadd.f32 0.0, %v738
    %v740 = vpop.f32.mrf.mxu0
    %741 = vdwg.mxu0
    %744 = vrot.lane.b32.xlu0 %v648, 32
    %v745 = vpop.permute.xlu0 %744
    %746 = vrot.lane.b32.xlu0 %v651, 32
    %v747 = vpop.permute.xlu0 %746
    %752 = vrot.lane.b32.xlu0 %v692, 64
    %v753 = vpop.permute.xlu0 %752
    %754 = vrot.lane.b32.xlu0 %v695, 64
    %v755 = vpop.permute.xlu0 %754
    %760 = vrot.lane.b32.xlu0 %v736, 96
    %v761 = vpop.permute.xlu0 %760
    %762 = vrot.lane.b32.xlu0 %v739, 96
    %v763 = vpop.permute.xlu0 %762
    %v766 = vsel %vm284, %v604, %v745
    %v767 = vsel %vm284, %v607, %v747
    %vm768 = vcmask 523264
    %v769 = vsel %vm768, %v766, %v753
    %v770 = vsel %vm768, %v767, %v755
    %vm771 = vcmask 785408
    %v772 = vsel %vm771, %v769, %v761
    %v773 = vsel %vm771, %v770, %v763
    %v774 = vld [vmem:[#allocation8] sm:$0xf]
    %v775 = vld [vmem:[#allocation8 + $0x4] sm:$0xf]
    %v776 = vld [vmem:[#allocation8 + $0x8] sm:$0xf]
    %v777 = vld [vmem:[#allocation8 + $0xc] sm:$0xf]
    %v778 = vld [vmem:[#allocation8 + $0x10] sm:$0xf]
    %v779 = vld [vmem:[#allocation8 + $0x14] sm:$0xf]
    %v780 = vld [vmem:[#allocation8 + $0x18] sm:$0xf]
    %v781 = vld [vmem:[#allocation8 + $0x1c] sm:$0xf]
    %v782 = vld [vmem:[#allocation8 + $0x20] sm:$0xf]
    %v783 = vld [vmem:[#allocation8 + $0x24] sm:$0xf]
    %v784 = vld [vmem:[#allocation8 + $0x28] sm:$0xf]
    %v785 = vld [vmem:[#allocation8 + $0x2c] sm:$0xf]
    %v786 = vld [vmem:[#allocation8 + $0x30] sm:$0xf]
    %v787 = vld [vmem:[#allocation8 + $0x34] sm:$0xf]
    %v788 = vld [vmem:[#allocation8 + $0x38] sm:$0xf]
    %v789 = vld [vmem:[#allocation8 + $0x3c] sm:$0xf]
    %v790 = vpack.c.bf16 %v773, %v772
    %v791 = vld [vmem:[%s5] sm:$0x1]
    %v793 = vlaneseq
    %v794 = vshrl.u32 %v793, 7
    %v795 = vsub.s32 0, %v794
    %v796 = vrot.slane %v791, %v795
    %v814 = vunpack.c.l.b16 %v774
    %v815 = vunpack.c.l.b16 %v775
    %v816 = vunpack.c.l.b16 %v776
    %v817 = vunpack.c.l.b16 %v777
    %v818 = vunpack.c.l.b16 %v778
    %v819 = vunpack.c.l.b16 %v779
    %v820 = vunpack.c.l.b16 %v780
    %v821 = vunpack.c.l.b16 %v781
    %v822 = vunpack.c.l.b16 %v782
    %v823 = vunpack.c.l.b16 %v783
    %v824 = vunpack.c.l.b16 %v784
    %v825 = vunpack.c.l.b16 %v785
    %v826 = vunpack.c.l.b16 %v786
    %v827 = vunpack.c.l.b16 %v787
    %v828 = vunpack.c.l.b16 %v788
    %v829 = vunpack.c.l.b16 %v789
    %v830 = vpack.c.b16 %v815, %v814
    %v831 = vpack.c.b16 %v817, %v816
    %v832 = vpack.c.b16 %v819, %v818
    %v833 = vpack.c.b16 %v821, %v820
    %v834 = vpack.c.b16 %v823, %v822
    %v835 = vpack.c.b16 %v825, %v824
    %v836 = vpack.c.b16 %v827, %v826
    %v837 = vpack.c.b16 %v829, %v828
    %846 = vmatprep.subr.bf16.mxu0 0
    %847 = vmatpush1.bf16.msra.mxu0 %v837
    %848 = vmatprep.subr.bf16.mxu0 0
    %849 = vmatpush1.bf16.msra.mxu0 %v836
    %850 = vmatprep.subr.bf16.mxu0 0
    %851 = vmatpush1.bf16.msra.mxu0 %v835
    %852 = vmatprep.subr.bf16.mxu0 0
    %853 = vmatpush1.bf16.msra.mxu0 %v834
    %854 = vmatprep.subr.bf16.mxu0 0
    %855 = vmatpush1.bf16.msra.mxu0 %v833
    %856 = vmatprep.subr.bf16.mxu0 0
    %857 = vmatpush1.bf16.msra.mxu0 %v832
    %858 = vmatprep.subr.bf16.mxu0 0
    %859 = vmatpush1.bf16.msra.mxu0 %v831
    %860 = vmatprep.subr.bf16.mxu0 0
    %861 = vmatpush1.bf16.msra.mxu0 %v830
    %862 = vmatprep.subr.bf16.mxu0 0
    %863 = vmatpush2.bf16.msra.mxu0 0
    %864 = vmatprep.subr.bf16.mxu0 0
    %865 = vmatpush2.bf16.msra.mxu0 0
    %866 = vmatprep.subr.bf16.mxu0 0
    %867 = vmatpush2.bf16.msra.mxu0 0
    %868 = vmatprep.subr.bf16.mxu0 0
    %869 = vmatpush2.bf16.msra.mxu0 0
    %870 = vmatprep.subr.bf16.mxu0 0
    %871 = vmatpush2.bf16.msra.mxu0 0
    %872 = vmatprep.subr.bf16.mxu0 0
    %873 = vmatpush2.bf16.msra.mxu0 0
    %874 = vmatprep.subr.bf16.mxu0 0
    %875 = vmatpush2.bf16.msra.mxu0 0
    %876 = vmatprep.subr.bf16.mxu0 0
    %877 = vmatpush2.bf16.msra.mxu0 0
    %878 = vmatprep.mubr.bf16.mxu0 0
    %879 = vmatmul.mubr.bf16.gmra.mxu0 %v790
    %v880 = vpop.f32.mrf.mxu0
    %v881 = vadd.f32 %v796, %v880
    %v882 = vpop.f32.mrf.mxu0
    %v883 = vpop.f32.mrf.mxu0
    %v884 = vadd.f32 %v796, %v883
    %v885 = vpop.f32.mrf.mxu0
    %886 = vdwg.mxu0
    %v887 = vadd.f32 %v881, %v131
    %v888 = vadd.f32 %v884, %v132
    %v889 = vld [vmem:[%s6] sm:$0x1]
    %v890 = vld [vmem:[%s7] sm:$0x1]
    %891 = vadd.xlane.f32.xlu0 %v887
    %v892 = vpop.xlane.xlu0 %891
    %893 = vadd.xlane.f32.xlu0 %v888
    %v894 = vpop.xlane.xlu0 %893
    %v895 = vrcp.pop 128.0
    %v896 = vmul.f32 %v892, %v895
    %v897 = vmul.f32 %v894, %v895
    %v898 = vsub.f32 %v887, %v896
    %v899 = vsub.f32 %v888, %v897
    %v900 = vmul.f32 %v898, %v898
    %v901 = vmul.f32 %v899, %v899
    %902 = vadd.xlane.f32.xlu0 %v900
    %v903 = vpop.xlane.xlu0 %902
    %904 = vadd.xlane.f32.xlu0 %v901
    %v905 = vpop.xlane.xlu0 %904
    %v906 = vmul.f32 %v903, %v895
    %v907 = vmul.f32 %v905, %v895
    %v908 = vadd.f32 %v906, 1e-12
    %v909 = vadd.f32 %v907, 1e-12
    %v910 = vrsqrt.pop %v908
    %v911 = vrsqrt.pop %v909
    %v912 = vmul.f32 %v898, %v910
    %v913 = vmul.f32 %v899, %v911
    %v915 = vlaneseq
    %v916 = vshrl.u32 %v915, 7
    %v917 = vsub.s32 0, %v916
    %v918 = vrot.slane %v889, %v917
    %v920 = vmul.f32 %v918, %v912
    %v921 = vmul.f32 %v918, %v913
    %v923 = vlaneseq
    %v924 = vshrl.u32 %v923, 7
    %v925 = vsub.s32 0, %v924
    %v926 = vrot.slane %v890, %v925
    %v928 = vadd.f32 %v920, %v926
    %v929 = vadd.f32 %v921, %v926
    %v930 = vld [vmem:[#allocation10] sm:$0xff]
    %v931 = vld [vmem:[#allocation10 + $0x8] sm:$0xff]
    %v932 = vld [vmem:[#allocation10 + $0x10] sm:$0xff]
    %v933 = vld [vmem:[#allocation10 + $0x18] sm:$0xff]
    %v934 = vld [vmem:[#allocation10 + $0x20] sm:$0xff]
    %v935 = vld [vmem:[#allocation10 + $0x28] sm:$0xff]
    %v936 = vld [vmem:[#allocation10 + $0x30] sm:$0xff]
    %v937 = vld [vmem:[#allocation10 + $0x38] sm:$0xff]
    %v938 = vld [vmem:[#allocation10 + $0x40] sm:$0xff]
    %v939 = vld [vmem:[#allocation10 + $0x48] sm:$0xff]
    %v940 = vld [vmem:[#allocation10 + $0x50] sm:$0xff]
    %v941 = vld [vmem:[#allocation10 + $0x58] sm:$0xff]
    %v942 = vld [vmem:[#allocation10 + $0x60] sm:$0xff]
    %v943 = vld [vmem:[#allocation10 + $0x68] sm:$0xff]
    %v944 = vld [vmem:[#allocation10 + $0x70] sm:$0xff]
    %v945 = vld [vmem:[#allocation10 + $0x78] sm:$0xff]
    %v946 = vld [vmem:[#allocation10 + $0x80] sm:$0xff]
    %v947 = vld [vmem:[#allocation10 + $0x88] sm:$0xff]
    %v948 = vld [vmem:[#allocation10 + $0x90] sm:$0xff]
    %v949 = vld [vmem:[#allocation10 + $0x98] sm:$0xff]
    %v950 = vld [vmem:[#allocation10 + $0xa0] sm:$0xff]
    %v951 = vld [vmem:[#allocation10 + $0xa8] sm:$0xff]
    %v952 = vld [vmem:[#allocation10 + $0xb0] sm:$0xff]
    %v953 = vld [vmem:[#allocation10 + $0xb8] sm:$0xff]
    %v954 = vld [vmem:[#allocation10 + $0xc0] sm:$0xff]
    %v955 = vld [vmem:[#allocation10 + $0xc8] sm:$0xff]
    %v956 = vld [vmem:[#allocation10 + $0xd0] sm:$0xff]
    %v957 = vld [vmem:[#allocation10 + $0xd8] sm:$0xff]
    %v958 = vld [vmem:[#allocation10 + $0xe0] sm:$0xff]
    %v959 = vld [vmem:[#allocation10 + $0xe8] sm:$0xff]
    %v960 = vld [vmem:[#allocation10 + $0xf0] sm:$0xff]
    %v961 = vld [vmem:[#allocation10 + $0xf8] sm:$0xff]
    %v962 = vpack.c.bf16 %v929, %v928
    %v963 = vld [vmem:[%s9] sm:$0xf]
    %v965 = vlaneseq
    %v966 = vshrl.u32 %v965, 7
    %v967 = vsub.s32 0, %v966
    %v968 = vrot.slane %v963, %v967
    %v969 = vlaneseq
    %v970 = vshrl.u32 %v969, 7
    %v971 = vsub.s32 1, %v970
    %v972 = vrot.slane %v963, %v971
    %v973 = vlaneseq
    %v974 = vshrl.u32 %v973, 7
    %v975 = vsub.s32 2, %v974
    %v976 = vrot.slane %v963, %v975
    %v977 = vlaneseq
    %v978 = vshrl.u32 %v977, 7
    %v979 = vsub.s32 3, %v978
    %v980 = vrot.slane %v963, %v979
    %v1017 = vunpack.c.l.b16 %v930
    %v1018 = vunpack.c.h.b16 %v930
    %v1019 = vunpack.c.l.b16 %v931
    %v1020 = vunpack.c.h.b16 %v931
    %v1021 = vunpack.c.l.b16 %v932
    %v1022 = vunpack.c.h.b16 %v932
    %v1023 = vunpack.c.l.b16 %v933
    %v1024 = vunpack.c.h.b16 %v933
    %v1025 = vunpack.c.l.b16 %v934
    %v1026 = vunpack.c.h.b16 %v934
    %v1027 = vunpack.c.l.b16 %v935
    %v1028 = vunpack.c.h.b16 %v935
    %v1029 = vunpack.c.l.b16 %v936
    %v1030 = vunpack.c.h.b16 %v936
    %v1031 = vunpack.c.l.b16 %v937
    %v1032 = vunpack.c.h.b16 %v937
    %v1033 = vunpack.c.l.b16 %v938
    %v1034 = vunpack.c.h.b16 %v938
    %v1035 = vunpack.c.l.b16 %v939
    %v1036 = vunpack.c.h.b16 %v939
    %v1037 = vunpack.c.l.b16 %v940
    %v1038 = vunpack.c.h.b16 %v940
    %v1039 = vunpack.c.l.b16 %v941
    %v1040 = vunpack.c.h.b16 %v941
    %v1041 = vunpack.c.l.b16 %v942
    %v1042 = vunpack.c.h.b16 %v942
    %v1043 = vunpack.c.l.b16 %v943
    %v1044 = vunpack.c.h.b16 %v943
    %v1045 = vunpack.c.l.b16 %v944
    %v1046 = vunpack.c.h.b16 %v944
    %v1047 = vunpack.c.l.b16 %v945
    %v1048 = vunpack.c.h.b16 %v945
    %v1049 = vunpack.c.l.b16 %v946
    %v1050 = vunpack.c.h.b16 %v946
    %v1051 = vunpack.c.l.b16 %v947
    %v1052 = vunpack.c.h.b16 %v947
    %v1053 = vunpack.c.l.b16 %v948
    %v1054 = vunpack.c.h.b16 %v948
    %v1055 = vunpack.c.l.b16 %v949
    %v1056 = vunpack.c.h.b16 %v949
    %v1057 = vunpack.c.l.b16 %v950
    %v1058 = vunpack.c.h.b16 %v950
    %v1059 = vunpack.c.l.b16 %v951
    %v1060 = vunpack.c.h.b16 %v951
    %v1061 = vunpack.c.l.b16 %v952
    %v1062 = vunpack.c.h.b16 %v952
    %v1063 = vunpack.c.l.b16 %v953
    %v1064 = vunpack.c.h.b16 %v953
    %v1065 = vunpack.c.l.b16 %v954
    %v1066 = vunpack.c.h.b16 %v954
    %v1067 = vunpack.c.l.b16 %v955
    %v1068 = vunpack.c.h.b16 %v955
    %v1069 = vunpack.c.l.b16 %v956
    %v1070 = vunpack.c.h.b16 %v956
    %v1071 = vunpack.c.l.b16 %v957
    %v1072 = vunpack.c.h.b16 %v957
    %v1073 = vunpack.c.l.b16 %v958
    %v1074 = vunpack.c.h.b16 %v958
    %v1075 = vunpack.c.l.b16 %v959
    %v1076 = vunpack.c.h.b16 %v959
    %v1077 = vunpack.c.l.b16 %v960
    %v1078 = vunpack.c.h.b16 %v960
    %v1079 = vunpack.c.l.b16 %v961
    %v1080 = vunpack.c.h.b16 %v961
    %v1081 = vpack.c.b16 %v1021, %v1017
    %v1082 = vpack.c.b16 %v1022, %v1018
    %v1083 = vpack.c.b16 %v1023, %v1019
    %v1084 = vpack.c.b16 %v1024, %v1020
    %v1085 = vpack.c.b16 %v1029, %v1025
    %v1086 = vpack.c.b16 %v1030, %v1026
    %v1087 = vpack.c.b16 %v1031, %v1027
    %v1088 = vpack.c.b16 %v1032, %v1028
    %v1089 = vpack.c.b16 %v1037, %v1033
    %v1090 = vpack.c.b16 %v1038, %v1034
    %v1091 = vpack.c.b16 %v1039, %v1035
    %v1092 = vpack.c.b16 %v1040, %v1036
    %v1093 = vpack.c.b16 %v1045, %v1041
    %v1094 = vpack.c.b16 %v1046, %v1042
    %v1095 = vpack.c.b16 %v1047, %v1043
    %v1096 = vpack.c.b16 %v1048, %v1044
    %v1097 = vpack.c.b16 %v1053, %v1049
    %v1098 = vpack.c.b16 %v1054, %v1050
    %v1099 = vpack.c.b16 %v1055, %v1051
    %v1100 = vpack.c.b16 %v1056, %v1052
    %v1101 = vpack.c.b16 %v1061, %v1057
    %v1102 = vpack.c.b16 %v1062, %v1058
    %v1103 = vpack.c.b16 %v1063, %v1059
    %v1104 = vpack.c.b16 %v1064, %v1060
    %v1105 = vpack.c.b16 %v1069, %v1065
    %v1106 = vpack.c.b16 %v1070, %v1066
    %v1107 = vpack.c.b16 %v1071, %v1067
    %v1108 = vpack.c.b16 %v1072, %v1068
    %v1109 = vpack.c.b16 %v1077, %v1073
    %v1110 = vpack.c.b16 %v1078, %v1074
    %v1111 = vpack.c.b16 %v1079, %v1075
    %v1112 = vpack.c.b16 %v1080, %v1076
    %1145 = vmatprep.subr.bf16.mxu0 %v1110
    %1146 = vmatpush1.bf16.msra.mxu0 %v1109
    %1147 = vmatprep.subr.bf16.mxu0 %v1106
    %1148 = vmatpush1.bf16.msra.mxu0 %v1105
    %1149 = vmatprep.subr.bf16.mxu0 %v1102
    %1150 = vmatpush1.bf16.msra.mxu0 %v1101
    %1151 = vmatprep.subr.bf16.mxu0 %v1098
    %1152 = vmatpush1.bf16.msra.mxu0 %v1097
    %1153 = vmatprep.subr.bf16.mxu0 %v1094
    %1154 = vmatpush1.bf16.msra.mxu0 %v1093
    %1155 = vmatprep.subr.bf16.mxu0 %v1090
    %1156 = vmatpush1.bf16.msra.mxu0 %v1089
    %1157 = vmatprep.subr.bf16.mxu0 %v1086
    %1158 = vmatpush1.bf16.msra.mxu0 %v1085
    %1159 = vmatprep.subr.bf16.mxu0 %v1082
    %1160 = vmatpush1.bf16.msra.mxu0 %v1081
    %1161 = vmatprep.subr.bf16.mxu0 0
    %1162 = vmatpush2.bf16.msra.mxu0 0
    %1163 = vmatprep.subr.bf16.mxu0 0
    %1164 = vmatpush2.bf16.msra.mxu0 0
    %1165 = vmatprep.subr.bf16.mxu0 0
    %1166 = vmatpush2.bf16.msra.mxu0 0
    %1167 = vmatprep.subr.bf16.mxu0 0
    %1168 = vmatpush2.bf16.msra.mxu0 0
    %1169 = vmatprep.subr.bf16.mxu0 0
    %1170 = vmatpush2.bf16.msra.mxu0 0
    %1171 = vmatprep.subr.bf16.mxu0 0
    %1172 = vmatpush2.bf16.msra.mxu0 0
    %1173 = vmatprep.subr.bf16.mxu0 0
    %1174 = vmatpush2.bf16.msra.mxu0 0
    %1175 = vmatprep.subr.bf16.mxu0 0
    %1176 = vmatpush2.bf16.msra.mxu0 0
    %1177 = vmatprep.mubr.bf16.mxu0 0
    %1178 = vmatmul.mubr.bf16.gmra.mxu0 %v962
    %v1179 = vpop.f32.mrf.mxu0
    %v1180 = vadd.f32 %v968, %v1179
    %v1181 = vpop.f32.mrf.mxu0
    %v1182 = vadd.f32 %v972, %v1181
    %v1183 = vpop.f32.mrf.mxu0
    %v1184 = vadd.f32 %v968, %v1183
    %v1185 = vpop.f32.mrf.mxu0
    %v1186 = vadd.f32 %v972, %v1185
    %1187 = vdwg.mxu0
    %1188 = vmatprep.subr.bf16.mxu0 %v1112
    %1189 = vmatpush1.bf16.msra.mxu0 %v1111
    %1190 = vmatprep.subr.bf16.mxu0 %v1108
    %1191 = vmatpush1.bf16.msra.mxu0 %v1107
    %1192 = vmatprep.subr.bf16.mxu0 %v1104
    %1193 = vmatpush1.bf16.msra.mxu0 %v1103
    %1194 = vmatprep.subr.bf16.mxu0 %v1100
    %1195 = vmatpush1.bf16.msra.mxu0 %v1099
    %1196 = vmatprep.subr.bf16.mxu0 %v1096
    %1197 = vmatpush1.bf16.msra.mxu0 %v1095
    %1198 = vmatprep.subr.bf16.mxu0 %v1092
    %1199 = vmatpush1.bf16.msra.mxu0 %v1091
    %1200 = vmatprep.subr.bf16.mxu0 %v1088
    %1201 = vmatpush1.bf16.msra.mxu0 %v1087
    %1202 = vmatprep.subr.bf16.mxu0 %v1084
    %1203 = vmatpush1.bf16.msra.mxu0 %v1083
    %1204 = vmatprep.subr.bf16.mxu0 0
    %1205 = vmatpush2.bf16.msra.mxu0 0
    %1206 = vmatprep.subr.bf16.mxu0 0
    %1207 = vmatpush2.bf16.msra.mxu0 0
    %1208 = vmatprep.subr.bf16.mxu0 0
    %1209 = vmatpush2.bf16.msra.mxu0 0
    %1210 = vmatprep.subr.bf16.mxu0 0
    %1211 = vmatpush2.bf16.msra.mxu0 0
    %1212 = vmatprep.subr.bf16.mxu0 0
    %1213 = vmatpush2.bf16.msra.mxu0 0
    %1214 = vmatprep.subr.bf16.mxu0 0
    %1215 = vmatpush2.bf16.msra.mxu0 0
    %1216 = vmatprep.subr.bf16.mxu0 0
    %1217 = vmatpush2.bf16.msra.mxu0 0
    %1218 = vmatprep.subr.bf16.mxu0 0
    %1219 = vmatpush2.bf16.msra.mxu0 0
    %1220 = vmatprep.mubr.bf16.mxu0 0
    %1221 = vmatmul.mubr.bf16.gmra.mxu0 %v962
    %v1222 = vpop.f32.mrf.mxu0
    %v1223 = vadd.f32 %v976, %v1222
    %v1224 = vpop.f32.mrf.mxu0
    %v1225 = vadd.f32 %v980, %v1224
    %v1226 = vpop.f32.mrf.mxu0
    %v1227 = vadd.f32 %v976, %v1226
    %v1228 = vpop.f32.mrf.mxu0
    %v1229 = vadd.f32 %v980, %v1228
    %1230 = vdwg.mxu0
    %v1231 = vmul.f32 %v1180, 0.5
    %v1232 = vmul.f32 %v1182, 0.5
    %v1233 = vmul.f32 %v1223, 0.5
    %v1234 = vmul.f32 %v1225, 0.5
    %v1235 = vmul.f32 %v1184, 0.5
    %v1236 = vmul.f32 %v1186, 0.5
    %v1237 = vmul.f32 %v1227, 0.5
    %v1238 = vmul.f32 %v1229, 0.5
    %v1239 = vmul.f32 %v1180, 0.70710677
    %v1240 = vmul.f32 %v1182, 0.70710677
    %v1241 = vmul.f32 %v1223, 0.70710677
    %v1242 = vmul.f32 %v1225, 0.70710677
    %v1243 = vmul.f32 %v1184, 0.70710677
    %v1244 = vmul.f32 %v1186, 0.70710677
    %v1245 = vmul.f32 %v1227, 0.70710677
    %v1246 = vmul.f32 %v1229, 0.70710677
    %v1247 = vmax.f32 %v1239, -3.832507
    %v1248 = vmax.f32 %v1240, -3.832507
    %v1249 = vmax.f32 %v1241, -3.832507
    %v1250 = vmax.f32 %v1242, -3.832507
    %v1251 = vmax.f32 %v1243, -3.832507
    %v1252 = vmax.f32 %v1244, -3.832507
    %v1253 = vmax.f32 %v1245, -3.832507
    %v1254 = vmax.f32 %v1246, -3.832507
    %v1255 = vmin.f32 %v1247, 3.832507
    %v1256 = vmin.f32 %v1248, 3.832507
    %v1257 = vmin.f32 %v1249, 3.832507
    %v1258 = vmin.f32 %v1250, 3.832507
    %v1259 = vmin.f32 %v1251, 3.832507
    %v1260 = vmin.f32 %v1252, 3.832507
    %v1261 = vmin.f32 %v1253, 3.832507
    %v1262 = vmin.f32 %v1254, 3.832507
    %v1263 = vmul.f32 %v1255, %v1255
    %v1264 = vmul.f32 %v1256, %v1256
    %v1265 = vmul.f32 %v1257, %v1257
    %v1266 = vmul.f32 %v1258, %v1258
    %v1267 = vmul.f32 %v1259, %v1259
    %v1268 = vmul.f32 %v1260, %v1260
    %v1269 = vmul.f32 %v1261, %v1261
    %v1270 = vmul.f32 %v1262, %v1262
    %v1271 = vmul.f32 %v1263, 0.00022905065
    %v1272 = vmul.f32 %v1264, 0.00022905065
    %v1273 = vmul.f32 %v1265, 0.00022905065
    %v1274 = vmul.f32 %v1266, 0.00022905065
    %v1275 = vmul.f32 %v1267, 0.00022905065
    %v1276 = vmul.f32 %v1268, 0.00022905065
    %v1277 = vmul.f32 %v1269, 0.00022905065
    %v1278 = vmul.f32 %v1270, 0.00022905065
    %v1279 = vadd.f32 %v1271, 0.003408291
    %v1280 = vadd.f32 %v1272, 0.003408291
    %v1281 = vadd.f32 %v1273, 0.003408291
    %v1282 = vadd.f32 %v1274, 0.003408291
    %v1283 = vadd.f32 %v1275, 0.003408291
    %v1284 = vadd.f32 %v1276, 0.003408291
    %v1285 = vadd.f32 %v1277, 0.003408291
    %v1286 = vadd.f32 %v1278, 0.003408291
    %v1287 = vmul.f32 %v1279, %v1263
    %v1288 = vmul.f32 %v1280, %v1264
    %v1289 = vmul.f32 %v1281, %v1265
    %v1290 = vmul.f32 %v1282, %v1266
    %v1291 = vmul.f32 %v1283, %v1267
    %v1292 = vmul.f32 %v1284, %v1268
    %v1293 = vmul.f32 %v1285, %v1269
    %v1294 = vmul.f32 %v1286, %v1270
    %v1295 = vadd.f32 %v1287, 0.050955694
    %v1296 = vadd.f32 %v1288, 0.050955694
    %v1297 = vadd.f32 %v1289, 0.050955694
    %v1298 = vadd.f32 %v1290, 0.050955694
    %v1299 = vadd.f32 %v1291, 0.050955694
    %v1300 = vadd.f32 %v1292, 0.050955694
    %v1301 = vadd.f32 %v1293, 0.050955694
    %v1302 = vadd.f32 %v1294, 0.050955694
    %v1303 = vmul.f32 %v1295, %v1263
    %v1304 = vmul.f32 %v1296, %v1264
    %v1305 = vmul.f32 %v1297, %v1265
    %v1306 = vmul.f32 %v1298, %v1266
    %v1307 = vmul.f32 %v1299, %v1267
    %v1308 = vmul.f32 %v1300, %v1268
    %v1309 = vmul.f32 %v1301, %v1269
    %v1310 = vmul.f32 %v1302, %v1270
    %v1311 = vadd.f32 %v1303, 0.18520832
    %v1312 = vadd.f32 %v1304, 0.18520832
    %v1313 = vadd.f32 %v1305, 0.18520832
    %v1314 = vadd.f32 %v1306, 0.18520832
    %v1315 = vadd.f32 %v1307, 0.18520832
    %v1316 = vadd.f32 %v1308, 0.18520832
    %v1317 = vadd.f32 %v1309, 0.18520832
    %v1318 = vadd.f32 %v1310, 0.18520832
    %v1319 = vmul.f32 %v1311, %v1263
    %v1320 = vmul.f32 %v1312, %v1264
    %v1321 = vmul.f32 %v1313, %v1265
    %v1322 = vmul.f32 %v1314, %v1266
    %v1323 = vmul.f32 %v1315, %v1267
    %v1324 = vmul.f32 %v1316, %v1268
    %v1325 = vmul.f32 %v1317, %v1269
    %v1326 = vmul.f32 %v1318, %v1270
    %v1327 = vadd.f32 %v1319, 1.1283791
    %v1328 = vadd.f32 %v1320, 1.1283791
    %v1329 = vadd.f32 %v1321, 1.1283791
    %v1330 = vadd.f32 %v1322, 1.1283791
    %v1331 = vadd.f32 %v1323, 1.1283791
    %v1332 = vadd.f32 %v1324, 1.1283791
    %v1333 = vadd.f32 %v1325, 1.1283791
    %v1334 = vadd.f32 %v1326, 1.1283791
    %v1335 = vmul.f32 %v1263, -1.1791603e-07
    %v1336 = vmul.f32 %v1264, -1.1791603e-07
    %v1337 = vmul.f32 %v1265, -1.1791603e-07
    %v1338 = vmul.f32 %v1266, -1.1791603e-07
    %v1339 = vmul.f32 %v1267, -1.1791603e-07
    %v1340 = vmul.f32 %v1268, -1.1791603e-07
    %v1341 = vmul.f32 %v1269, -1.1791603e-07
    %v1342 = vmul.f32 %v1270, -1.1791603e-07
    %v1343 = vadd.f32 %v1335, 2.3547966e-05
    %v1344 = vadd.f32 %v1336, 2.3547966e-05
    %v1345 = vadd.f32 %v1337, 2.3547966e-05
    %v1346 = vadd.f32 %v1338, 2.3547966e-05
    %v1347 = vadd.f32 %v1339, 2.3547966e-05
    %v1348 = vadd.f32 %v1340, 2.3547966e-05
    %v1349 = vadd.f32 %v1341, 2.3547966e-05
    %v1350 = vadd.f32 %v1342, 2.3547966e-05
    %v1351 = vmul.f32 %v1343, %v1263
    %v1352 = vmul.f32 %v1344, %v1264
    %v1353 = vmul.f32 %v1345, %v1265
    %v1354 = vmul.f32 %v1346, %v1266
    %v1355 = vmul.f32 %v1347, %v1267
    %v1356 = vmul.f32 %v1348, %v1268
    %v1357 = vmul.f32 %v1349, %v1269
    %v1358 = vmul.f32 %v1350, %v1270
    %v1359 = vadd.f32 %v1351, 0.0010179626
    %v1360 = vadd.f32 %v1352, 0.0010179626
    %v1361 = vadd.f32 %v1353, 0.0010179626
    %v1362 = vadd.f32 %v1354, 0.0010179626
    %v1363 = vadd.f32 %v1355, 0.0010179626
    %v1364 = vadd.f32 %v1356, 0.0010179626
    %v1365 = vadd.f32 %v1357, 0.0010179626
    %v1366 = vadd.f32 %v1358, 0.0010179626
    %v1367 = vmul.f32 %v1359, %v1263
    %v1368 = vmul.f32 %v1360, %v1264
    %v1369 = vmul.f32 %v1361, %v1265
    %v1370 = vmul.f32 %v1362, %v1266
    %v1371 = vmul.f32 %v1363, %v1267
    %v1372 = vmul.f32 %v1364, %v1268
    %v1373 = vmul.f32 %v1365, %v1269
    %v1374 = vmul.f32 %v1366, %v1270
    %v1375 = vadd.f32 %v1367, 0.01407047
    %v1376 = vadd.f32 %v1368, 0.01407047
    %v1377 = vadd.f32 %v1369, 0.01407047
    %v1378 = vadd.f32 %v1370, 0.01407047
    %v1379 = vadd.f32 %v1371, 0.01407047
    %v1380 = vadd.f32 %v1372, 0.01407047
    %v1381 = vadd.f32 %v1373, 0.01407047
    %v1382 = vadd.f32 %v1374, 0.01407047
    %v1383 = vmul.f32 %v1375, %v1263
    %v1384 = vmul.f32 %v1376, %v1264
    %v1385 = vmul.f32 %v1377, %v1265
    %v1386 = vmul.f32 %v1378, %v1266
    %v1387 = vmul.f32 %v1379, %v1267
    %v1388 = vmul.f32 %v1380, %v1268
    %v1389 = vmul.f32 %v1381, %v1269
    %v1390 = vmul.f32 %v1382, %v1270
    %v1391 = vadd.f32 %v1383, 0.11098505
    %v1392 = vadd.f32 %v1384, 0.11098505
    %v1393 = vadd.f32 %v1385, 0.11098505
    %v1394 = vadd.f32 %v1386, 0.11098505
    %v1395 = vadd.f32 %v1387, 0.11098505
    %v1396 = vadd.f32 %v1388, 0.11098505
    %v1397 = vadd.f32 %v1389, 0.11098505
    %v1398 = vadd.f32 %v1390, 0.11098505
    %v1399 = vmul.f32 %v1391, %v1263
    %v1400 = vmul.f32 %v1392, %v1264
    %v1401 = vmul.f32 %v1393, %v1265
    %v1402 = vmul.f32 %v1394, %v1266
    %v1403 = vmul.f32 %v1395, %v1267
    %v1404 = vmul.f32 %v1396, %v1268
    %v1405 = vmul.f32 %v1397, %v1269
    %v1406 = vmul.f32 %v1398, %v1270
    %v1407 = vadd.f32 %v1399, 0.49746925
    %v1408 = vadd.f32 %v1400, 0.49746925
    %v1409 = vadd.f32 %v1401, 0.49746925
    %v1410 = vadd.f32 %v1402, 0.49746925
    %v1411 = vadd.f32 %v1403, 0.49746925
    %v1412 = vadd.f32 %v1404, 0.49746925
    %v1413 = vadd.f32 %v1405, 0.49746925
    %v1414 = vadd.f32 %v1406, 0.49746925
    %v1415 = vmul.f32 %v1407, %v1263
    %v1416 = vmul.f32 %v1408, %v1264
    %v1417 = vmul.f32 %v1409, %v1265
    %v1418 = vmul.f32 %v1410, %v1266
    %v1419 = vmul.f32 %v1411, %v1267
    %v1420 = vmul.f32 %v1412, %v1268
    %v1421 = vmul.f32 %v1413, %v1269
    %v1422 = vmul.f32 %v1414, %v1270
    %v1423 = vadd.f32 %v1415, 1.0
    %v1424 = vadd.f32 %v1416, 1.0
    %v1425 = vadd.f32 %v1417, 1.0
    %v1426 = vadd.f32 %v1418, 1.0
    %v1427 = vadd.f32 %v1419, 1.0
    %v1428 = vadd.f32 %v1420, 1.0
    %v1429 = vadd.f32 %v1421, 1.0
    %v1430 = vadd.f32 %v1422, 1.0
    %v1431 = vmul.f32 %v1255, %v1327
    %v1432 = vmul.f32 %v1256, %v1328
    %v1433 = vmul.f32 %v1257, %v1329
    %v1434 = vmul.f32 %v1258, %v1330
    %v1435 = vmul.f32 %v1259, %v1331
    %v1436 = vmul.f32 %v1260, %v1332
    %v1437 = vmul.f32 %v1261, %v1333
    %v1438 = vmul.f32 %v1262, %v1334
    %v1439 = vrcp.pop %v1423
    %v1440 = vmul.f32 %v1431, %v1439
    %v1441 = vrcp.pop %v1424
    %v1442 = vmul.f32 %v1432, %v1441
    %v1443 = vrcp.pop %v1425
    %v1444 = vmul.f32 %v1433, %v1443
    %v1445 = vrcp.pop %v1426
    %v1446 = vmul.f32 %v1434, %v1445
    %v1447 = vrcp.pop %v1427
    %v1448 = vmul.f32 %v1435, %v1447
    %v1449 = vrcp.pop %v1428
    %v1450 = vmul.f32 %v1436, %v1449
    %v1451 = vrcp.pop %v1429
    %v1452 = vmul.f32 %v1437, %v1451
    %v1453 = vrcp.pop %v1430
    %v1454 = vmul.f32 %v1438, %v1453
    %v1455 = vadd.f32 %v1440, 1.0
    %v1456 = vadd.f32 %v1442, 1.0
    %v1457 = vadd.f32 %v1444, 1.0
    %v1458 = vadd.f32 %v1446, 1.0
    %v1459 = vadd.f32 %v1448, 1.0
    %v1460 = vadd.f32 %v1450, 1.0
    %v1461 = vadd.f32 %v1452, 1.0
    %v1462 = vadd.f32 %v1454, 1.0
    %v1463 = vmul.f32 %v1231, %v1455
    %v1464 = vmul.f32 %v1232, %v1456
    %v1465 = vmul.f32 %v1233, %v1457
    %v1466 = vmul.f32 %v1234, %v1458
    %v1467 = vmul.f32 %v1235, %v1459
    %v1468 = vmul.f32 %v1236, %v1460
    %v1469 = vmul.f32 %v1237, %v1461
    %v1470 = vmul.f32 %v1238, %v1462
    %v1471 = vld [vmem:[#allocation11] sm:$0xf]
    %v1472 = vld [vmem:[#allocation11 + $0x4] sm:$0xf]
    %v1473 = vld [vmem:[#allocation11 + $0x8] sm:$0xf]
    %v1474 = vld [vmem:[#allocation11 + $0xc] sm:$0xf]
    %v1475 = vld [vmem:[#allocation11 + $0x10] sm:$0xf]
    %v1476 = vld [vmem:[#allocation11 + $0x14] sm:$0xf]
    %v1477 = vld [vmem:[#allocation11 + $0x18] sm:$0xf]
    %v1478 = vld [vmem:[#allocation11 + $0x1c] sm:$0xf]
    %v1479 = vld [vmem:[#allocation11 + $0x20] sm:$0xf]
    %v1480 = vld [vmem:[#allocation11 + $0x24] sm:$0xf]
    %v1481 = vld [vmem:[#allocation11 + $0x28] sm:$0xf]
    %v1482 = vld [vmem:[#allocation11 + $0x2c] sm:$0xf]
    %v1483 = vld [vmem:[#allocation11 + $0x30] sm:$0xf]
    %v1484 = vld [vmem:[#allocation11 + $0x34] sm:$0xf]
    %v1485 = vld [vmem:[#allocation11 + $0x38] sm:$0xf]
    %v1486 = vld [vmem:[#allocation11 + $0x3c] sm:$0xf]
    %v1487 = vld [vmem:[#allocation11 + $0x40] sm:$0xf]
    %v1488 = vld [vmem:[#allocation11 + $0x44] sm:$0xf]
    %v1489 = vld [vmem:[#allocation11 + $0x48] sm:$0xf]
    %v1490 = vld [vmem:[#allocation11 + $0x4c] sm:$0xf]
    %v1491 = vld [vmem:[#allocation11 + $0x50] sm:$0xf]
    %v1492 = vld [vmem:[#allocation11 + $0x54] sm:$0xf]
    %v1493 = vld [vmem:[#allocation11 + $0x58] sm:$0xf]
    %v1494 = vld [vmem:[#allocation11 + $0x5c] sm:$0xf]
    %v1495 = vld [vmem:[#allocation11 + $0x60] sm:$0xf]
    %v1496 = vld [vmem:[#allocation11 + $0x64] sm:$0xf]
    %v1497 = vld [vmem:[#allocation11 + $0x68] sm:$0xf]
    %v1498 = vld [vmem:[#allocation11 + $0x6c] sm:$0xf]
    %v1499 = vld [vmem:[#allocation11 + $0x70] sm:$0xf]
    %v1500 = vld [vmem:[#allocation11 + $0x74] sm:$0xf]
    %v1501 = vld [vmem:[#allocation11 + $0x78] sm:$0xf]
    %v1502 = vld [vmem:[#allocation11 + $0x7c] sm:$0xf]
    %v1503 = vld [vmem:[#allocation11 + $0x80] sm:$0xf]
    %v1504 = vld [vmem:[#allocation11 + $0x84] sm:$0xf]
    %v1505 = vld [vmem:[#allocation11 + $0x88] sm:$0xf]
    %v1506 = vld [vmem:[#allocation11 + $0x8c] sm:$0xf]
    %v1507 = vld [vmem:[#allocation11 + $0x90] sm:$0xf]
    %v1508 = vld [vmem:[#allocation11 + $0x94] sm:$0xf]
    %v1509 = vld [vmem:[#allocation11 + $0x98] sm:$0xf]
    %v1510 = vld [vmem:[#allocation11 + $0x9c] sm:$0xf]
    %v1511 = vld [vmem:[#allocation11 + $0xa0] sm:$0xf]
    %v1512 = vld [vmem:[#allocation11 + $0xa4] sm:$0xf]
    %v1513 = vld [vmem:[#allocation11 + $0xa8] sm:$0xf]
    %v1514 = vld [vmem:[#allocation11 + $0xac] sm:$0xf]
    %v1515 = vld [vmem:[#allocation11 + $0xb0] sm:$0xf]
    %v1516 = vld [vmem:[#allocation11 + $0xb4] sm:$0xf]
    %v1517 = vld [vmem:[#allocation11 + $0xb8] sm:$0xf]
    %v1518 = vld [vmem:[#allocation11 + $0xbc] sm:$0xf]
    %v1519 = vld [vmem:[#allocation11 + $0xc0] sm:$0xf]
    %v1520 = vld [vmem:[#allocation11 + $0xc4] sm:$0xf]
    %v1521 = vld [vmem:[#allocation11 + $0xc8] sm:$0xf]
    %v1522 = vld [vmem:[#allocation11 + $0xcc] sm:$0xf]
    %v1523 = vld [vmem:[#allocation11 + $0xd0] sm:$0xf]
    %v1524 = vld [vmem:[#allocation11 + $0xd4] sm:$0xf]
    %v1525 = vld [vmem:[#allocation11 + $0xd8] sm:$0xf]
    %v1526 = vld [vmem:[#allocation11 + $0xdc] sm:$0xf]
    %v1527 = vld [vmem:[#allocation11 + $0xe0] sm:$0xf]
    %v1528 = vld [vmem:[#allocation11 + $0xe4] sm:$0xf]
    %v1529 = vld [vmem:[#allocation11 + $0xe8] sm:$0xf]
    %v1530 = vld [vmem:[#allocation11 + $0xec] sm:$0xf]
    %v1531 = vld [vmem:[#allocation11 + $0xf0] sm:$0xf]
    %v1532 = vld [vmem:[#allocation11 + $0xf4] sm:$0xf]
    %v1533 = vld [vmem:[#allocation11 + $0xf8] sm:$0xf]
    %v1534 = vld [vmem:[#allocation11 + $0xfc] sm:$0xf]
    %v1535 = vpack.c.bf16 %v1467, %v1463
    %v1536 = vpack.c.bf16 %v1468, %v1464
    %v1537 = vpack.c.bf16 %v1469, %v1465
    %v1538 = vpack.c.bf16 %v1470, %v1466
    %v1539 = vld [vmem:[%s11] sm:$0x1]
    %v1541 = vlaneseq
    %v1542 = vshrl.u32 %v1541, 7
    %v1543 = vsub.s32 0, %v1542
    %v1544 = vrot.slane %v1539, %v1543
    %v1610 = vunpack.c.l.b16 %v1471
    %v1611 = vunpack.c.l.b16 %v1472
    %v1612 = vunpack.c.l.b16 %v1473
    %v1613 = vunpack.c.l.b16 %v1474
    %v1614 = vunpack.c.l.b16 %v1475
    %v1615 = vunpack.c.l.b16 %v1476
    %v1616 = vunpack.c.l.b16 %v1477
    %v1617 = vunpack.c.l.b16 %v1478
    %v1618 = vunpack.c.l.b16 %v1479
    %v1619 = vunpack.c.l.b16 %v1480
    %v1620 = vunpack.c.l.b16 %v1481
    %v1621 = vunpack.c.l.b16 %v1482
    %v1622 = vunpack.c.l.b16 %v1483
    %v1623 = vunpack.c.l.b16 %v1484
    %v1624 = vunpack.c.l.b16 %v1485
    %v1625 = vunpack.c.l.b16 %v1486
    %v1626 = vunpack.c.l.b16 %v1487
    %v1627 = vunpack.c.l.b16 %v1488
    %v1628 = vunpack.c.l.b16 %v1489
    %v1629 = vunpack.c.l.b16 %v1490
    %v1630 = vunpack.c.l.b16 %v1491
    %v1631 = vunpack.c.l.b16 %v1492
    %v1632 = vunpack.c.l.b16 %v1493
    %v1633 = vunpack.c.l.b16 %v1494
    %v1634 = vunpack.c.l.b16 %v1495
    %v1635 = vunpack.c.l.b16 %v1496
    %v1636 = vunpack.c.l.b16 %v1497
    %v1637 = vunpack.c.l.b16 %v1498
    %v1638 = vunpack.c.l.b16 %v1499
    %v1639 = vunpack.c.l.b16 %v1500
    %v1640 = vunpack.c.l.b16 %v1501
    %v1641 = vunpack.c.l.b16 %v1502
    %v1642 = vunpack.c.l.b16 %v1503
    %v1643 = vunpack.c.l.b16 %v1504
    %v1644 = vunpack.c.l.b16 %v1505
    %v1645 = vunpack.c.l.b16 %v1506
    %v1646 = vunpack.c.l.b16 %v1507
    %v1647 = vunpack.c.l.b16 %v1508
    %v1648 = vunpack.c.l.b16 %v1509
    %v1649 = vunpack.c.l.b16 %v1510
    %v1650 = vunpack.c.l.b16 %v1511
    %v1651 = vunpack.c.l.b16 %v1512
    %v1652 = vunpack.c.l.b16 %v1513
    %v1653 = vunpack.c.l.b16 %v1514
    %v1654 = vunpack.c.l.b16 %v1515
    %v1655 = vunpack.c.l.b16 %v1516
    %v1656 = vunpack.c.l.b16 %v1517
    %v1657 = vunpack.c.l.b16 %v1518
    %v1658 = vunpack.c.l.b16 %v1519
    %v1659 = vunpack.c.l.b16 %v1520
    %v1660 = vunpack.c.l.b16 %v1521
    %v1661 = vunpack.c.l.b16 %v1522
    %v1662 = vunpack.c.l.b16 %v1523
    %v1663 = vunpack.c.l.b16 %v1524
    %v1664 = vunpack.c.l.b16 %v1525
    %v1665 = vunpack.c.l.b16 %v1526
    %v1666 = vunpack.c.l.b16 %v1527
    %v1667 = vunpack.c.l.b16 %v1528
    %v1668 = vunpack.c.l.b16 %v1529
    %v1669 = vunpack.c.l.b16 %v1530
    %v1670 = vunpack.c.l.b16 %v1531
    %v1671 = vunpack.c.l.b16 %v1532
    %v1672 = vunpack.c.l.b16 %v1533
    %v1673 = vunpack.c.l.b16 %v1534
    %v1674 = vpack.c.b16 %v1611, %v1610
    %v1675 = vpack.c.b16 %v1613, %v1612
    %v1676 = vpack.c.b16 %v1615, %v1614
    %v1677 = vpack.c.b16 %v1617, %v1616
    %v1678 = vpack.c.b16 %v1619, %v1618
    %v1679 = vpack.c.b16 %v1621, %v1620
    %v1680 = vpack.c.b16 %v1623, %v1622
    %v1681 = vpack.c.b16 %v1625, %v1624
    %v1682 = vpack.c.b16 %v1627, %v1626
    %v1683 = vpack.c.b16 %v1629, %v1628
    %v1684 = vpack.c.b16 %v1631, %v1630
    %v1685 = vpack.c.b16 %v1633, %v1632
    %v1686 = vpack.c.b16 %v1635, %v1634
    %v1687 = vpack.c.b16 %v1637, %v1636
    %v1688 = vpack.c.b16 %v1639, %v1638
    %v1689 = vpack.c.b16 %v1641, %v1640
    %v1690 = vpack.c.b16 %v1643, %v1642
    %v1691 = vpack.c.b16 %v1645, %v1644
    %v1692 = vpack.c.b16 %v1647, %v1646
    %v1693 = vpack.c.b16 %v1649, %v1648
    %v1694 = vpack.c.b16 %v1651, %v1650
    %v1695 = vpack.c.b16 %v1653, %v1652
    %v1696 = vpack.c.b16 %v1655, %v1654
    %v1697 = vpack.c.b16 %v1657, %v1656
    %v1698 = vpack.c.b16 %v1659, %v1658
    %v1699 = vpack.c.b16 %v1661, %v1660
    %v1700 = vpack.c.b16 %v1663, %v1662
    %v1701 = vpack.c.b16 %v1665, %v1664
    %v1702 = vpack.c.b16 %v1667, %v1666
    %v1703 = vpack.c.b16 %v1669, %v1668
    %v1704 = vpack.c.b16 %v1671, %v1670
    %v1705 = vpack.c.b16 %v1673, %v1672
    %1738 = vmatprep.subr.bf16.mxu0 0
    %1739 = vmatpush1.bf16.msra.mxu0 %v1681
    %1740 = vmatprep.subr.bf16.mxu0 0
    %1741 = vmatpush1.bf16.msra.mxu0 %v1680
    %1742 = vmatprep.subr.bf16.mxu0 0
    %1743 = vmatpush1.bf16.msra.mxu0 %v1679
    %1744 = vmatprep.subr.bf16.mxu0 0
    %1745 = vmatpush1.bf16.msra.mxu0 %v1678
    %1746 = vmatprep.subr.bf16.mxu0 0
    %1747 = vmatpush1.bf16.msra.mxu0 %v1677
    %1748 = vmatprep.subr.bf16.mxu0 0
    %1749 = vmatpush1.bf16.msra.mxu0 %v1676
    %1750 = vmatprep.subr.bf16.mxu0 0
    %1751 = vmatpush1.bf16.msra.mxu0 %v1675
    %1752 = vmatprep.subr.bf16.mxu0 0
    %1753 = vmatpush1.bf16.msra.mxu0 %v1674
    %1754 = vmatprep.subr.bf16.mxu0 0
    %1755 = vmatpush2.bf16.msra.mxu0 %v1689
    %1756 = vmatprep.subr.bf16.mxu0 0
    %1757 = vmatpush2.bf16.msra.mxu0 %v1688
    %1758 = vmatprep.subr.bf16.mxu0 0
    %1759 = vmatpush2.bf16.msra.mxu0 %v1687
    %1760 = vmatprep.subr.bf16.mxu0 0
    %1761 = vmatpush2.bf16.msra.mxu0 %v1686
    %1762 = vmatprep.subr.bf16.mxu0 0
    %1763 = vmatpush2.bf16.msra.mxu0 %v1685
    %1764 = vmatprep.subr.bf16.mxu0 0
    %1765 = vmatpush2.bf16.msra.mxu0 %v1684
    %1766 = vmatprep.subr.bf16.mxu0 0
    %1767 = vmatpush2.bf16.msra.mxu0 %v1683
    %1768 = vmatprep.subr.bf16.mxu0 0
    %1769 = vmatpush2.bf16.msra.mxu0 %v1682
    %1770 = vmatprep.mubr.bf16.mxu0 %v1536
    %1771 = vmatmul.mubr.bf16.gmra.mxu0 %v1535
    %v1772 = vpop.f32.mrf.mxu0
    %v1773 = vadd.f32 %v1544, %v1772
    %v1774 = vpop.f32.mrf.mxu0
    %v1775 = vpop.f32.mrf.mxu0
    %v1776 = vadd.f32 %v1544, %v1775
    %v1777 = vpop.f32.mrf.mxu0
    %1778 = vdwg.mxu0
    %1779 = vmatprep.subr.bf16.mxu0 0
    %1780 = vmatpush1.bf16.msra.mxu0 %v1697
    %1781 = vmatprep.subr.bf16.mxu0 0
    %1782 = vmatpush1.bf16.msra.mxu0 %v1696
    %1783 = vmatprep.subr.bf16.mxu0 0
    %1784 = vmatpush1.bf16.msra.mxu0 %v1695
    %1785 = vmatprep.subr.bf16.mxu0 0
    %1786 = vmatpush1.bf16.msra.mxu0 %v1694
    %1787 = vmatprep.subr.bf16.mxu0 0
    %1788 = vmatpush1.bf16.msra.mxu0 %v1693
    %1789 = vmatprep.subr.bf16.mxu0 0
    %1790 = vmatpush1.bf16.msra.mxu0 %v1692
    %1791 = vmatprep.subr.bf16.mxu0 0
    %1792 = vmatpush1.bf16.msra.mxu0 %v1691
    %1793 = vmatprep.subr.bf16.mxu0 0
    %1794 = vmatpush1.bf16.msra.mxu0 %v1690
    %1795 = vmatprep.subr.bf16.mxu0 0
    %1796 = vmatpush2.bf16.msra.mxu0 %v1705
    %1797 = vmatprep.subr.bf16.mxu0 0
    %1798 = vmatpush2.bf16.msra.mxu0 %v1704
    %1799 = vmatprep.subr.bf16.mxu0 0
    %1800 = vmatpush2.bf16.msra.mxu0 %v1703
    %1801 = vmatprep.subr.bf16.mxu0 0
    %1802 = vmatpush2.bf16.msra.mxu0 %v1702
    %1803 = vmatprep.subr.bf16.mxu0 0
    %1804 = vmatpush2.bf16.msra.mxu0 %v1701
    %1805 = vmatprep.subr.bf16.mxu0 0
    %1806 = vmatpush2.bf16.msra.mxu0 %v1700
    %1807 = vmatprep.subr.bf16.mxu0 0
    %1808 = vmatpush2.bf16.msra.mxu0 %v1699
    %1809 = vmatprep.subr.bf16.mxu0 0
    %1810 = vmatpush2.bf16.msra.mxu0 %v1698
    %1811 = vmatprep.mubr.bf16.mxu0 %v1538
    %1812 = vmatmul.mubr.bf16.gmra.mxu0 %v1537
    %v1813 = vpop.f32.mrf.mxu0
    %v1814 = vadd.f32 %v1773, %v1813
    %v1815 = vpop.f32.mrf.mxu0
    %v1816 = vpop.f32.mrf.mxu0
    %v1817 = vadd.f32 %v1776, %v1816
    %v1818 = vpop.f32.mrf.mxu0
    %1819 = vdwg.mxu0
    %v1820 = vadd.f32 %v1814, %v928
    %v1821 = vadd.f32 %v1817, %v929
    %v1822 = vld [vmem:[%s12] sm:$0x1]
    %v1823 = vld [vmem:[%s13] sm:$0x1]
    %1824 = vadd.xlane.f32.xlu0 %v1820
    %v1825 = vpop.xlane.xlu0 %1824
    %1826 = vadd.xlane.f32.xlu0 %v1821
    %v1827 = vpop.xlane.xlu0 %1826
    %v1828 = vmul.f32 %v1825, %v895
    %v1829 = vmul.f32 %v1827, %v895
    %v1830 = vsub.f32 %v1820, %v1828
    %v1831 = vsub.f32 %v1821, %v1829
    %v1832 = vmul.f32 %v1830, %v1830
    %v1833 = vmul.f32 %v1831, %v1831
    %1834 = vadd.xlane.f32.xlu0 %v1832
    %v1835 = vpop.xlane.xlu0 %1834
    %1836 = vadd.xlane.f32.xlu0 %v1833
    %v1837 = vpop.xlane.xlu0 %1836
    %v1838 = vmul.f32 %v1835, %v895
    %v1839 = vmul.f32 %v1837, %v895
    %v1840 = vadd.f32 %v1838, 1e-12
    %v1841 = vadd.f32 %v1839, 1e-12
    %v1842 = vrsqrt.pop %v1840
    %v1843 = vrsqrt.pop %v1841
    %v1844 = vmul.f32 %v1830, %v1842
    %v1845 = vmul.f32 %v1831, %v1843
    %v1847 = vlaneseq
    %v1848 = vshrl.u32 %v1847, 7
    %v1849 = vsub.s32 0, %v1848
    %v1850 = vrot.slane %v1822, %v1849
    %v1852 = vmul.f32 %v1850, %v1844
    %v1853 = vmul.f32 %v1850, %v1845
    %v1855 = vlaneseq
    %v1856 = vshrl.u32 %v1855, 7
    %v1857 = vsub.s32 0, %v1856
    %v1858 = vrot.slane %v1823, %v1857
    %v1860 = vadd.f32 %v1852, %v1858
    %v1861 = vadd.f32 %v1853, %v1858
    %1862 = vst [vmem:[#allocation13] sm:$0xff] %v1860
    %1863 = vst [vmem:[#allocation13 + $0x8] sm:$0xff] %v1861
    // Predicated region
    $region82: #{tpu_custom_call.1} parent=1 // pred_check
      _
    $region83: #{tpu_custom_call.1} parent=1 // pred_check_branch
      %1865 = sbr.rel (0) target = $region85
    $region84: #{tpu_custom_call.1} parent=1 // pred_region
      %s1867 = ssub.s32 256, 256
      %1868 = vsyncadd [#allocation4], %s1867
      %s1869 = sshll.u32 [#allocation13], 4
      %s1870 = int_to_ptr.vmem [resolvable:$true] %s1869
      %1875 = dma.vmem_to_hbm [thread:$0]  %s1870, 256, %s14, [#allocation4], 128, 128, 8
    $region85: #{tpu_custom_call.1} parent=1 // pred_fallthru
      _
    // Predicated region
    $region86: #{tpu_custom_call.1} parent=1 // pred_check
      _
    $region87: #{tpu_custom_call.1} parent=1 // pred_check_branch
      %1877 = sbr.rel (0) target = $region89
    $region88: #{tpu_custom_call.1} parent=1 // pred_region
      %1878 = dma.done [#allocation4], 256
    $region89: #{tpu_custom_call.1} parent=1 // pred_fallthru
      _
    %1879 = vsyncpa [#allocation3], 1
    %1880 = vsyncpa [#allocation6], 1
    %1881 = vsyncpa [#allocation9], 1
    %1882 = vsyncpa [#allocation12], 1
    %1883 = vsyncpa [#allocation4], 1

</llo_original>
